<compile_context>
chip_gen: v6e
topology: v6e:2x2x1
jax: 0.10.0
libtpu: 0.0.40
codegen_flags: <defaults>
</compile_context>

<pallas_src>
import jax
import jax.numpy as jnp
import numpy as np
from jax.experimental import pallas as pl
from jax.experimental.pallas import tpu as pltpu


def _critic_kernel(state_ref, pp_ref, w2c_ref, w2f_ref, w1f_hbm,
                   o_ref, out1_scr, l1_scr, w1f_vmem, w1f_sem):
    f32 = jnp.float32
    bf16 = jnp.bfloat16

    # ---- Start the big fc1-weight DMA immediately; it overlaps conv1/conv2.
    w1f_copy = pltpu.make_async_copy(w1f_hbm, w1f_vmem, w1f_sem)
    w1f_copy.start()

    # ---- Per-call scalars straight from SMEM (no wrapper ops, no lane bcasts).
    rate = state_ref[0, 0]
    delay = state_ref[0, 1]
    loss = state_ref[0, 2]

    # ---- conv1 (1 -> 64, k=3) on the VPU:
    #      out1[s, c] = conv1_b[c] + sum_j bw[s+j] * conv1_w[j, c],  s = 0..5
    b1 = pp_ref[8:9, 0:64]
    w10 = pp_ref[11:12, 0:64]
    w11 = pp_ref[12:13, 0:64]
    w12 = pp_ref[13:14, 0:64]
    for s in range(6):
        out1_scr[s:s + 1, :] = (b1
                                + state_ref[0, 3 + s] * w10
                                + state_ref[0, 4 + s] * w11
                                + state_ref[0, 5 + s] * w12)

    # ---- conv2 (64 -> 128, k=3) as three accumulated MXU dots whose LHS are
    #      plain sublane-offset views of out1 (no lane shuffles, no masked
    #      lane-group stores on the path into the MXU).
    out2 = (pp_ref[9:10, 0:128]
            + jnp.dot(out1_scr[0:4, :].astype(bf16), w2c_ref[0:64, :],
                      preferred_element_type=f32)
            + jnp.dot(out1_scr[1:5, :].astype(bf16), w2c_ref[64:128, :],
                      preferred_element_type=f32)
            + jnp.dot(out1_scr[2:6, :].astype(bf16), w2c_ref[128:192, :],
                      preferred_element_type=f32))          # (4, 128)  [t, c]

    # ---- fc1 (515 -> 320): K=512 MXU dot over the conv features only.
    #      LHS lane layout: lane t*128 + c = out2[t, c].
    l1_scr[0:1, 0:128] = out2[0:1, :]
    l1_scr[0:1, 128:256] = out2[1:2, :]
    l1_scr[0:1, 256:384] = out2[2:3, :]
    l1_scr[0:1, 384:512] = out2[3:4, :]

    w1f_copy.wait()                                          # weight now in VMEM
    h = jnp.dot(l1_scr[...].astype(bf16), w1f_vmem[...],
                preferred_element_type=f32)                  # (1, 320)
    # scalar-feature columns + fc1 bias applied as post-dot VPU corrections
    h = (h
         + rate * pp_ref[14:15, :]
         + delay * pp_ref[15:16, :]
         + loss * pp_ref[16:17, :]
         + pp_ref[17:18, :])
    h = jnp.maximum(h, 0.0)

    # ---- fc2 (320 -> 64) on the MXU
    h = jnp.dot(h.astype(bf16), w2f_ref[...],
                preferred_element_type=f32) + pp_ref[10:11, 0:64]   # (1, 64)
    h = jnp.maximum(h, 0.0)

    # ---- fc3 (64 -> 8) on VPU + lane reduction (no MXU round trip)
    h3 = jnp.sum(h * pp_ref[0:8, 0:64], axis=1, keepdims=True) + pp_ref[0:8, 64:65]
    h3 = jnp.maximum(h3, 0.0)                                # (8, 1)

    # ---- fc4 (8 -> 1) on VPU + sublane reduction
    o_ref[...] = (jnp.sum(h3 * pp_ref[0:8, 65:66], axis=0, keepdims=True)
                  + pp_ref[0:1, 66:67])                      # (1, 1)


def init_params(key):
    """Deterministic synthetic parameters with the same shapes as the PyTorch module."""
    ks = jax.random.split(key, 12)
    s = 0.1
    return dict(
        conv1_w=jax.random.normal(ks[0], (64, 1, 3), jnp.float32) * s,
        conv1_b=jax.random.normal(ks[1], (64,), jnp.float32) * s,
        conv2_w=jax.random.normal(ks[2], (128, 64, 3), jnp.float32) * s,
        conv2_b=jax.random.normal(ks[3], (128,), jnp.float32) * s,
        fc1_w=jax.random.normal(ks[4], (320, 515), jnp.float32) * s,
        fc1_b=jax.random.normal(ks[5], (320,), jnp.float32) * s,
        fc2_w=jax.random.normal(ks[6], (64, 320), jnp.float32) * s,
        fc2_b=jax.random.normal(ks[7], (64,), jnp.float32) * s,
        fc3_w=jax.random.normal(ks[8], (8, 64), jnp.float32) * s,
        fc3_b=jax.random.normal(ks[9], (8,), jnp.float32) * s,
        fc4_w=jax.random.normal(ks[10], (1, 8), jnp.float32) * s,
        fc4_b=jax.random.normal(ks[11], (1,), jnp.float32) * s,
    )


def prepare_params(P):
    """One-time parameter re-layout / packing — hoisted out of the per-call path."""
    f32 = jnp.float32
    bf16 = jnp.bfloat16

    # Packed small f32 parameters: (24, 320).
    pp = jnp.zeros((24, 320), f32)
    pp = pp.at[0:8, 0:64].set(P['fc3_w'])                               # fc3 weight (8,64)
    pp = pp.at[0:8, 64].set(P['fc3_b'])                                 # fc3 bias (column)
    pp = pp.at[0:8, 65].set(P['fc4_w'][0])                              # fc4 weight (column)
    pp = pp.at[0, 66].set(P['fc4_b'][0])                                # fc4 bias
    pp = pp.at[8, 0:64].set(P['conv1_b'])                               # conv1 bias
    pp = pp.at[9, 0:128].set(P['conv2_b'])                              # conv2 bias
    pp = pp.at[10, 0:64].set(P['fc2_b'])                                # fc2 bias
    pp = pp.at[11:14, 0:64].set(jnp.transpose(P['conv1_w'][:, 0, :], (1, 0)))  # conv1 w [k,c]
    # fc1 scalar-feature columns + fc1 bias, applied as post-dot corrections:
    pp = pp.at[14:17, :].set(P['fc1_w'][:, 0:3].T)                      # rate/delay/loss cols
    pp = pp.at[17, :].set(P['fc1_b'])                                   # fc1 bias

    # conv2 weight (192, 128) bf16: row = k*64 + c_in, col = c_out.
    w2c = jnp.transpose(P['conv2_w'], (2, 1, 0)).reshape(192, 128).astype(bf16)

    # fc1 weight, conv-feature rows only, K=512, reordered to [t, c] lane order:
    #   row t*128 + c  <-  fc1_w[:, 3 + c*4 + t]
    w1t = P['fc1_w'].T                                                  # (515, 320)
    conv_rows = w1t[3:, :].reshape(128, 4, 320).transpose(1, 0, 2).reshape(512, 320)
    w1f = conv_rows.astype(bf16)                                        # (512, 320)

    w2f = P['fc2_w'].T.astype(bf16)                                     # (320, 64)

    return dict(pp=pp, w2c=w2c, w1f=w1f, w2f=w2f)


def critic_forward(state, prepped):
    # No per-call glue at all: the raw state row goes straight into SMEM.
    state = state.astype(jnp.float32)
    return pl.pallas_call(
        _critic_kernel,
        out_shape=jax.ShapeDtypeStruct((1, 1), jnp.float32),
        in_specs=[
            pl.BlockSpec(memory_space=pltpu.MemorySpace.SMEM),   # state row (scalars)
            pl.BlockSpec(memory_space=pltpu.MemorySpace.VMEM),   # pp (packed small params)
            pl.BlockSpec(memory_space=pltpu.MemorySpace.VMEM),   # conv2 weight
            pl.BlockSpec(memory_space=pltpu.MemorySpace.VMEM),   # fc2 weight
            pl.BlockSpec(memory_space=pl.ANY),                   # fc1 weight stays in HBM
        ],
        out_specs=pl.BlockSpec(memory_space=pltpu.MemorySpace.VMEM),
        scratch_shapes=[
            pltpu.VMEM((8, 64), jnp.float32),       # conv1 output rows
            pltpu.VMEM((1, 512), jnp.float32),      # fc1 LHS assembly
            pltpu.VMEM((512, 320), jnp.bfloat16),   # fc1 weight landing buffer
            pltpu.SemaphoreType.DMA,                # fc1 weight DMA semaphore
        ],
    )(state, prepped['pp'], prepped['w2c'], prepped['w2f'], prepped['w1f'])
    # TODO(synk): the PyTorch forward is strictly batch=1 (it only reads state[0]);
    # if a real batch ever exists, add a leading "parallel" batch grid axis with
    # constant weight index_maps so weights stay resident and both v7x cores are used.


def reference_np(state, P):
    """Plain numpy re-implementation of the PyTorch forward for validation."""
    rr, dl, loss = state[0, 0], state[0, 1], state[0, 2]
    bw = state[0, 3:11]
    w1, b1 = P['conv1_w'], P['conv1_b']
    out1 = np.zeros((64, 6), np.float32)
    for c in range(64):
        for t in range(6):
            out1[c, t] = b1[c] + np.dot(w1[c, 0, :], bw[t:t + 3])
    w2, b2 = P['conv2_w'], P['conv2_b']
    out2 = np.zeros((128, 4), np.float32)
    for c in range(128):
        for t in range(4):
            out2[c, t] = b2[c] + np.sum(w2[c] * out1[:, t:t + 3])
    datain = np.concatenate([np.array([rr, dl, loss], np.float32), out2.reshape(-1)])
    h = np.maximum(P['fc1_w'] @ datain + P['fc1_b'], 0.0)
    h = np.maximum(P['fc2_w'] @ h + P['fc2_b'], 0.0)
    h = np.maximum(P['fc3_w'] @ h + P['fc3_b'], 0.0)
    out = P['fc4_w'] @ h + P['fc4_b']
    return out.reshape(1, 1).astype(np.float32)


if __name__ == "__main__":
    key = jax.random.PRNGKey(0)
    k_state, k_param = jax.random.split(key)
    # state_dim >= 11: rate, delay, loss, 8-long bandwidth history
    state = jax.random.uniform(k_state, (1, 11), jnp.float32)
    P = init_params(k_param)
    prepped = prepare_params(P)            # one-time re-layout, outside the hot path

    forward = jax.jit(critic_forward)
    out = jax.block_until_ready(forward(state, prepped))

    ref = reference_np(np.asarray(state), {k: np.asarray(v) for k, v in P.items()})
    assert out.shape == (1, 1) and out.dtype == jnp.float32
    # NOTE: weights/activations feeding the MXU are bf16 (f32 accumulation), so
    # tolerance vs. the f32 reference is intentionally loose (~1e-2 relative).
    np.testing.assert_allclose(np.asarray(out), ref, rtol=3e-2, atol=3e-2)
    print("KERNEL_OK")
</pallas_src>

<mosaic_0001>
module attributes {stable_mosaic.version = 11 : i64} {
  func.func @_critic_kernel(%arg0: memref<1x11xf32, #tpu.memory_space<smem>>, %arg1: memref<24x320xf32, #tpu.memory_space<vmem>>, %arg2: memref<192x128xbf16, #tpu.memory_space<vmem>>, %arg3: memref<320x64xbf16, #tpu.memory_space<vmem>>, %arg4: memref<512x320xbf16, #tpu.memory_space<any>>, %arg5: memref<1x1xf32, #tpu.memory_space<vmem>>, %arg6: memref<8x64xf32, #tpu.memory_space<vmem>>, %arg7: memref<1x512xf32, #tpu.memory_space<vmem>>, %arg8: memref<512x320xbf16, #tpu.memory_space<vmem>>, %arg9: memref<!tpu.dma_semaphore, #tpu.memory_space<semaphore_mem>>) attributes {dimension_semantics = [], scalar_prefetch = 0 : i64, scratch_operands = 4 : i64, tpu.core_type = #tpu.core_type<tc>} {
    tpu.enqueue_dma source(%arg4 : memref<512x320xbf16, #tpu.memory_space<any>>) target(%arg8 : memref<512x320xbf16, #tpu.memory_space<vmem>>) target_semaphore(%arg9 : memref<!tpu.dma_semaphore, #tpu.memory_space<semaphore_mem>>)
    %c0 = arith.constant 0 : index
    %c0_0 = arith.constant 0 : index
    %0 = memref.load %arg0[%c0, %c0_0] : memref<1x11xf32, #tpu.memory_space<smem>>
    %c0_1 = arith.constant 0 : index
    %c1 = arith.constant 1 : index
    %1 = memref.load %arg0[%c0_1, %c1] : memref<1x11xf32, #tpu.memory_space<smem>>
    %c0_2 = arith.constant 0 : index
    %c2 = arith.constant 2 : index
    %2 = memref.load %arg0[%c0_2, %c2] : memref<1x11xf32, #tpu.memory_space<smem>>
    %c8 = arith.constant 8 : index
    %c0_3 = arith.constant 0 : index
    %3 = vector.load %arg1[%c8, %c0_3] : memref<24x320xf32, #tpu.memory_space<vmem>>, vector<1x64xf32>
    %c11 = arith.constant 11 : index
    %c0_4 = arith.constant 0 : index
    %4 = vector.load %arg1[%c11, %c0_4] : memref<24x320xf32, #tpu.memory_space<vmem>>, vector<1x64xf32>
    %c12 = arith.constant 12 : index
    %c0_5 = arith.constant 0 : index
    %5 = vector.load %arg1[%c12, %c0_5] : memref<24x320xf32, #tpu.memory_space<vmem>>, vector<1x64xf32>
    %c13 = arith.constant 13 : index
    %c0_6 = arith.constant 0 : index
    %6 = vector.load %arg1[%c13, %c0_6] : memref<24x320xf32, #tpu.memory_space<vmem>>, vector<1x64xf32>
    %c0_7 = arith.constant 0 : index
    %c3 = arith.constant 3 : index
    %7 = memref.load %arg0[%c0_7, %c3] : memref<1x11xf32, #tpu.memory_space<smem>>
    %8 = vector.broadcast %7 : f32 to vector<1x64xf32>
    %9 = arith.mulf %8, %4 : vector<1x64xf32>
    %10 = arith.addf %3, %9 : vector<1x64xf32>
    %c0_8 = arith.constant 0 : index
    %c4 = arith.constant 4 : index
    %11 = memref.load %arg0[%c0_8, %c4] : memref<1x11xf32, #tpu.memory_space<smem>>
    %12 = vector.broadcast %11 : f32 to vector<1x64xf32>
    %13 = arith.mulf %12, %5 : vector<1x64xf32>
    %14 = arith.addf %10, %13 : vector<1x64xf32>
    %c0_9 = arith.constant 0 : index
    %c5 = arith.constant 5 : index
    %15 = memref.load %arg0[%c0_9, %c5] : memref<1x11xf32, #tpu.memory_space<smem>>
    %16 = vector.broadcast %15 : f32 to vector<1x64xf32>
    %17 = arith.mulf %16, %6 : vector<1x64xf32>
    %18 = arith.addf %14, %17 : vector<1x64xf32>
    %c0_10 = arith.constant 0 : index
    %c0_11 = arith.constant 0 : index
    %19 = vector.load %arg6[%c0_10, %c0_11] : memref<8x64xf32, #tpu.memory_space<vmem>>, vector<1x64xf32>
    tpu.vector_store %arg6[%c0_10, %c0_11], %18 {strides = array<i32>} : memref<8x64xf32, #tpu.memory_space<vmem>>, vector<1x64xf32>,
    %c0_12 = arith.constant 0 : index
    %c4_13 = arith.constant 4 : index
    %20 = memref.load %arg0[%c0_12, %c4_13] : memref<1x11xf32, #tpu.memory_space<smem>>
    %21 = vector.broadcast %20 : f32 to vector<1x64xf32>
    %22 = arith.mulf %21, %4 : vector<1x64xf32>
    %23 = arith.addf %3, %22 : vector<1x64xf32>
    %c0_14 = arith.constant 0 : index
    %c5_15 = arith.constant 5 : index
    %24 = memref.load %arg0[%c0_14, %c5_15] : memref<1x11xf32, #tpu.memory_space<smem>>
    %25 = vector.broadcast %24 : f32 to vector<1x64xf32>
    %26 = arith.mulf %25, %5 : vector<1x64xf32>
    %27 = arith.addf %23, %26 : vector<1x64xf32>
    %c0_16 = arith.constant 0 : index
    %c6 = arith.constant 6 : index
    %28 = memref.load %arg0[%c0_16, %c6] : memref<1x11xf32, #tpu.memory_space<smem>>
    %29 = vector.broadcast %28 : f32 to vector<1x64xf32>
    %30 = arith.mulf %29, %6 : vector<1x64xf32>
    %31 = arith.addf %27, %30 : vector<1x64xf32>
    %c1_17 = arith.constant 1 : index
    %c0_18 = arith.constant 0 : index
    %32 = vector.load %arg6[%c1_17, %c0_18] : memref<8x64xf32, #tpu.memory_space<vmem>>, vector<1x64xf32>
    tpu.vector_store %arg6[%c1_17, %c0_18], %31 {strides = array<i32>} : memref<8x64xf32, #tpu.memory_space<vmem>>, vector<1x64xf32>,
    %c0_19 = arith.constant 0 : index
    %c5_20 = arith.constant 5 : index
    %33 = memref.load %arg0[%c0_19, %c5_20] : memref<1x11xf32, #tpu.memory_space<smem>>
    %34 = vector.broadcast %33 : f32 to vector<1x64xf32>
    %35 = arith.mulf %34, %4 : vector<1x64xf32>
    %36 = arith.addf %3, %35 : vector<1x64xf32>
    %c0_21 = arith.constant 0 : index
    %c6_22 = arith.constant 6 : index
    %37 = memref.load %arg0[%c0_21, %c6_22] : memref<1x11xf32, #tpu.memory_space<smem>>
    %38 = vector.broadcast %37 : f32 to vector<1x64xf32>
    %39 = arith.mulf %38, %5 : vector<1x64xf32>
    %40 = arith.addf %36, %39 : vector<1x64xf32>
    %c0_23 = arith.constant 0 : index
    %c7 = arith.constant 7 : index
    %41 = memref.load %arg0[%c0_23, %c7] : memref<1x11xf32, #tpu.memory_space<smem>>
    %42 = vector.broadcast %41 : f32 to vector<1x64xf32>
    %43 = arith.mulf %42, %6 : vector<1x64xf32>
    %44 = arith.addf %40, %43 : vector<1x64xf32>
    %c2_24 = arith.constant 2 : index
    %c0_25 = arith.constant 0 : index
    %45 = vector.load %arg6[%c2_24, %c0_25] : memref<8x64xf32, #tpu.memory_space<vmem>>, vector<1x64xf32>
    tpu.vector_store %arg6[%c2_24, %c0_25], %44 {strides = array<i32>} : memref<8x64xf32, #tpu.memory_space<vmem>>, vector<1x64xf32>,
    %c0_26 = arith.constant 0 : index
    %c6_27 = arith.constant 6 : index
    %46 = memref.load %arg0[%c0_26, %c6_27] : memref<1x11xf32, #tpu.memory_space<smem>>
    %47 = vector.broadcast %46 : f32 to vector<1x64xf32>
    %48 = arith.mulf %47, %4 : vector<1x64xf32>
    %49 = arith.addf %3, %48 : vector<1x64xf32>
    %c0_28 = arith.constant 0 : index
    %c7_29 = arith.constant 7 : index
    %50 = memref.load %arg0[%c0_28, %c7_29] : memref<1x11xf32, #tpu.memory_space<smem>>
    %51 = vector.broadcast %50 : f32 to vector<1x64xf32>
    %52 = arith.mulf %51, %5 : vector<1x64xf32>
    %53 = arith.addf %49, %52 : vector<1x64xf32>
    %c0_30 = arith.constant 0 : index
    %c8_31 = arith.constant 8 : index
    %54 = memref.load %arg0[%c0_30, %c8_31] : memref<1x11xf32, #tpu.memory_space<smem>>
    %55 = vector.broadcast %54 : f32 to vector<1x64xf32>
    %56 = arith.mulf %55, %6 : vector<1x64xf32>
    %57 = arith.addf %53, %56 : vector<1x64xf32>
    %c3_32 = arith.constant 3 : index
    %c0_33 = arith.constant 0 : index
    %58 = vector.load %arg6[%c3_32, %c0_33] : memref<8x64xf32, #tpu.memory_space<vmem>>, vector<1x64xf32>
    tpu.vector_store %arg6[%c3_32, %c0_33], %57 {strides = array<i32>} : memref<8x64xf32, #tpu.memory_space<vmem>>, vector<1x64xf32>,
    %c0_34 = arith.constant 0 : index
    %c7_35 = arith.constant 7 : index
    %59 = memref.load %arg0[%c0_34, %c7_35] : memref<1x11xf32, #tpu.memory_space<smem>>
    %60 = vector.broadcast %59 : f32 to vector<1x64xf32>
    %61 = arith.mulf %60, %4 : vector<1x64xf32>
    %62 = arith.addf %3, %61 : vector<1x64xf32>
    %c0_36 = arith.constant 0 : index
    %c8_37 = arith.constant 8 : index
    %63 = memref.load %arg0[%c0_36, %c8_37] : memref<1x11xf32, #tpu.memory_space<smem>>
    %64 = vector.broadcast %63 : f32 to vector<1x64xf32>
    %65 = arith.mulf %64, %5 : vector<1x64xf32>
    %66 = arith.addf %62, %65 : vector<1x64xf32>
    %c0_38 = arith.constant 0 : index
    %c9 = arith.constant 9 : index
    %67 = memref.load %arg0[%c0_38, %c9] : memref<1x11xf32, #tpu.memory_space<smem>>
    %68 = vector.broadcast %67 : f32 to vector<1x64xf32>
    %69 = arith.mulf %68, %6 : vector<1x64xf32>
    %70 = arith.addf %66, %69 : vector<1x64xf32>
    %c4_39 = arith.constant 4 : index
    %c0_40 = arith.constant 0 : index
    %71 = vector.load %arg6[%c4_39, %c0_40] : memref<8x64xf32, #tpu.memory_space<vmem>>, vector<1x64xf32>
    tpu.vector_store %arg6[%c4_39, %c0_40], %70 {strides = array<i32>} : memref<8x64xf32, #tpu.memory_space<vmem>>, vector<1x64xf32>,
    %c0_41 = arith.constant 0 : index
    %c8_42 = arith.constant 8 : index
    %72 = memref.load %arg0[%c0_41, %c8_42] : memref<1x11xf32, #tpu.memory_space<smem>>
    %73 = vector.broadcast %72 : f32 to vector<1x64xf32>
    %74 = arith.mulf %73, %4 : vector<1x64xf32>
    %75 = arith.addf %3, %74 : vector<1x64xf32>
    %c0_43 = arith.constant 0 : index
    %c9_44 = arith.constant 9 : index
    %76 = memref.load %arg0[%c0_43, %c9_44] : memref<1x11xf32, #tpu.memory_space<smem>>
    %77 = vector.broadcast %76 : f32 to vector<1x64xf32>
    %78 = arith.mulf %77, %5 : vector<1x64xf32>
    %79 = arith.addf %75, %78 : vector<1x64xf32>
    %c0_45 = arith.constant 0 : index
    %c10 = arith.constant 10 : index
    %80 = memref.load %arg0[%c0_45, %c10] : memref<1x11xf32, #tpu.memory_space<smem>>
    %81 = vector.broadcast %80 : f32 to vector<1x64xf32>
    %82 = arith.mulf %81, %6 : vector<1x64xf32>
    %83 = arith.addf %79, %82 : vector<1x64xf32>
    %c5_46 = arith.constant 5 : index
    %c0_47 = arith.constant 0 : index
    %84 = vector.load %arg6[%c5_46, %c0_47] : memref<8x64xf32, #tpu.memory_space<vmem>>, vector<1x64xf32>
    tpu.vector_store %arg6[%c5_46, %c0_47], %83 {strides = array<i32>} : memref<8x64xf32, #tpu.memory_space<vmem>>, vector<1x64xf32>,
    %c9_48 = arith.constant 9 : index
    %c0_49 = arith.constant 0 : index
    %85 = vector.load %arg1[%c9_48, %c0_49] : memref<24x320xf32, #tpu.memory_space<vmem>>, vector<1x128xf32>
    %c0_50 = arith.constant 0 : index
    %c0_51 = arith.constant 0 : index
    %86 = vector.load %arg6[%c0_50, %c0_51] : memref<8x64xf32, #tpu.memory_space<vmem>>, vector<4x64xf32>
    %87 = arith.truncf %86 : vector<4x64xf32> to vector<4x64xbf16>
    %c0_52 = arith.constant 0 : index
    %c0_53 = arith.constant 0 : index
    %88 = vector.load %arg2[%c0_52, %c0_53] : memref<192x128xbf16, #tpu.memory_space<vmem>>, vector<64x128xbf16>
    %cst = arith.constant dense<0.000000e+00> : vector<4x128xf32>
    %89 = tpu.matmul %87, %88, %cst {dimension_numbers = #tpu.dot_dimension_numbers<[1], [0], [0], [1], [0, 0, 1, 1], [], []>} : vector<4x64xbf16>, vector<64x128xbf16>, vector<4x128xf32> -> vector<4x128xf32>
    %90 = vector.broadcast %85 : vector<1x128xf32> to vector<4x128xf32>
    %91 = arith.addf %90, %89 : vector<4x128xf32>
    %c1_54 = arith.constant 1 : index
    %c0_55 = arith.constant 0 : index
    %92 = vector.load %arg6[%c1_54, %c0_55] : memref<8x64xf32, #tpu.memory_space<vmem>>, vector<4x64xf32>
    %93 = arith.truncf %92 : vector<4x64xf32> to vector<4x64xbf16>
    %c64 = arith.constant 64 : index
    %c0_56 = arith.constant 0 : index
    %94 = vector.load %arg2[%c64, %c0_56] : memref<192x128xbf16, #tpu.memory_space<vmem>>, vector<64x128xbf16>
    %cst_57 = arith.constant dense<0.000000e+00> : vector<4x128xf32>
    %95 = tpu.matmul %93, %94, %cst_57 {dimension_numbers = #tpu.dot_dimension_numbers<[1], [0], [0], [1], [0, 0, 1, 1], [], []>} : vector<4x64xbf16>, vector<64x128xbf16>, vector<4x128xf32> -> vector<4x128xf32>
    %96 = arith.addf %91, %95 : vector<4x128xf32>
    %c2_58 = arith.constant 2 : index
    %c0_59 = arith.constant 0 : index
    %97 = vector.load %arg6[%c2_58, %c0_59] : memref<8x64xf32, #tpu.memory_space<vmem>>, vector<4x64xf32>
    %98 = arith.truncf %97 : vector<4x64xf32> to vector<4x64xbf16>
    %c128 = arith.constant 128 : index
    %c0_60 = arith.constant 0 : index
    %99 = vector.load %arg2[%c128, %c0_60] : memref<192x128xbf16, #tpu.memory_space<vmem>>, vector<64x128xbf16>
    %cst_61 = arith.constant dense<0.000000e+00> : vector<4x128xf32>
    %100 = tpu.matmul %98, %99, %cst_61 {dimension_numbers = #tpu.dot_dimension_numbers<[1], [0], [0], [1], [0, 0, 1, 1], [], []>} : vector<4x64xbf16>, vector<64x128xbf16>, vector<4x128xf32> -> vector<4x128xf32>
    %101 = arith.addf %96, %100 : vector<4x128xf32>
    %102 = vector.extract_strided_slice %101 {offsets = [0, 0], sizes = [1, 128], strides = [1, 1]} : vector<4x128xf32> to vector<1x128xf32>
    %c0_62 = arith.constant 0 : index
    %c0_63 = arith.constant 0 : index
    %103 = vector.load %arg7[%c0_62, %c0_63] : memref<1x512xf32, #tpu.memory_space<vmem>>, vector<1x128xf32>
    tpu.vector_store %arg7[%c0_62, %c0_63], %102 {strides = array<i32>} : memref<1x512xf32, #tpu.memory_space<vmem>>, vector<1x128xf32>,
    %104 = vector.extract_strided_slice %101 {offsets = [1, 0], sizes = [1, 128], strides = [1, 1]} : vector<4x128xf32> to vector<1x128xf32>
    %c0_64 = arith.constant 0 : index
    %c128_65 = arith.constant 128 : index
    %105 = vector.load %arg7[%c0_64, %c128_65] : memref<1x512xf32, #tpu.memory_space<vmem>>, vector<1x128xf32>
    tpu.vector_store %arg7[%c0_64, %c128_65], %104 {strides = array<i32>} : memref<1x512xf32, #tpu.memory_space<vmem>>, vector<1x128xf32>,
    %106 = vector.extract_strided_slice %101 {offsets = [2, 0], sizes = [1, 128], strides = [1, 1]} : vector<4x128xf32> to vector<1x128xf32>
    %c0_66 = arith.constant 0 : index
    %c256 = arith.constant 256 : index
    %107 = vector.load %arg7[%c0_66, %c256] : memref<1x512xf32, #tpu.memory_space<vmem>>, vector<1x128xf32>
    tpu.vector_store %arg7[%c0_66, %c256], %106 {strides = array<i32>} : memref<1x512xf32, #tpu.memory_space<vmem>>, vector<1x128xf32>,
    %108 = vector.extract_strided_slice %101 {offsets = [3, 0], sizes = [1, 128], strides = [1, 1]} : vector<4x128xf32> to vector<1x128xf32>
    %c0_67 = arith.constant 0 : index
    %c384 = arith.constant 384 : index
    %109 = vector.load %arg7[%c0_67, %c384] : memref<1x512xf32, #tpu.memory_space<vmem>>, vector<1x128xf32>
    tpu.vector_store %arg7[%c0_67, %c384], %108 {strides = array<i32>} : memref<1x512xf32, #tpu.memory_space<vmem>>, vector<1x128xf32>,
    tpu.wait_dma2 semaphore(%arg9 : memref<!tpu.dma_semaphore, #tpu.memory_space<semaphore_mem>>) src(%arg4 : memref<512x320xbf16, #tpu.memory_space<any>>) dst(%arg8 : memref<512x320xbf16, #tpu.memory_space<vmem>>)
    %c0_68 = arith.constant 0 : index
    %c0_69 = arith.constant 0 : index
    %110 = vector.load %arg7[%c0_68, %c0_69] : memref<1x512xf32, #tpu.memory_space<vmem>>, vector<1x512xf32>
    %111 = arith.truncf %110 : vector<1x512xf32> to vector<1x512xbf16>
    %c0_70 = arith.constant 0 : index
    %c0_71 = arith.constant 0 : index
    %112 = vector.load %arg8[%c0_70, %c0_71] : memref<512x320xbf16, #tpu.memory_space<vmem>>, vector<512x320xbf16>
    %cst_72 = arith.constant dense<0.000000e+00> : vector<1x320xf32>
    %113 = tpu.matmul %111, %112, %cst_72 {dimension_numbers = #tpu.dot_dimension_numbers<[1], [0], [0], [1], [0, 0, 1, 1], [], []>} : vector<1x512xbf16>, vector<512x320xbf16>, vector<1x320xf32> -> vector<1x320xf32>
    %c14 = arith.constant 14 : index
    %c0_73 = arith.constant 0 : index
    %114 = vector.load %arg1[%c14, %c0_73] : memref<24x320xf32, #tpu.memory_space<vmem>>, vector<1x320xf32>
    %115 = vector.broadcast %0 : f32 to vector<1x320xf32>
    %116 = arith.mulf %115, %114 : vector<1x320xf32>
    %117 = arith.addf %113, %116 : vector<1x320xf32>
    %c15 = arith.constant 15 : index
    %c0_74 = arith.constant 0 : index
    %118 = vector.load %arg1[%c15, %c0_74] : memref<24x320xf32, #tpu.memory_space<vmem>>, vector<1x320xf32>
    %119 = vector.broadcast %1 : f32 to vector<1x320xf32>
    %120 = arith.mulf %119, %118 : vector<1x320xf32>
    %121 = arith.addf %117, %120 : vector<1x320xf32>
    %c16 = arith.constant 16 : index
    %c0_75 = arith.constant 0 : index
    %122 = vector.load %arg1[%c16, %c0_75] : memref<24x320xf32, #tpu.memory_space<vmem>>, vector<1x320xf32>
    %123 = vector.broadcast %2 : f32 to vector<1x320xf32>
    %124 = arith.mulf %123, %122 : vector<1x320xf32>
    %125 = arith.addf %121, %124 : vector<1x320xf32>
    %c17 = arith.constant 17 : index
    %c0_76 = arith.constant 0 : index
    %126 = vector.load %arg1[%c17, %c0_76] : memref<24x320xf32, #tpu.memory_space<vmem>>, vector<1x320xf32>
    %127 = arith.addf %125, %126 : vector<1x320xf32>
    %cst_77 = arith.constant 0.000000e+00 : f32
    %128 = vector.broadcast %cst_77 : f32 to vector<1x320xf32>
    %129 = arith.maximumf %127, %128 : vector<1x320xf32>
    %130 = arith.truncf %129 : vector<1x320xf32> to vector<1x320xbf16>
    %c0_78 = arith.constant 0 : index
    %c0_79 = arith.constant 0 : index
    %131 = vector.load %arg3[%c0_78, %c0_79] : memref<320x64xbf16, #tpu.memory_space<vmem>>, vector<320x64xbf16>
    %cst_80 = arith.constant dense<0.000000e+00> : vector<1x64xf32>
    %132 = tpu.matmul %130, %131, %cst_80 {dimension_numbers = #tpu.dot_dimension_numbers<[1], [0], [0], [1], [0, 0, 1, 1], [], []>} : vector<1x320xbf16>, vector<320x64xbf16>, vector<1x64xf32> -> vector<1x64xf32>
    %c10_81 = arith.constant 10 : index
    %c0_82 = arith.constant 0 : index
    %133 = vector.load %arg1[%c10_81, %c0_82] : memref<24x320xf32, #tpu.memory_space<vmem>>, vector<1x64xf32>
    %134 = arith.addf %132, %133 : vector<1x64xf32>
    %cst_83 = arith.constant 0.000000e+00 : f32
    %135 = vector.broadcast %cst_83 : f32 to vector<1x64xf32>
    %136 = arith.maximumf %134, %135 : vector<1x64xf32>
    %c0_84 = arith.constant 0 : index
    %c0_85 = arith.constant 0 : index
    %137 = vector.load %arg1[%c0_84, %c0_85] : memref<24x320xf32, #tpu.memory_space<vmem>>, vector<8x64xf32>
    %138 = vector.broadcast %136 : vector<1x64xf32> to vector<8x64xf32>
    %139 = arith.mulf %138, %137 : vector<8x64xf32>
    %cst_86 = arith.constant dense<0.000000e+00> : vector<8xf32>
    %140 = vector.multi_reduction <add>, %139, %cst_86 [1] : vector<8x64xf32> to vector<8xf32>
    %141 = vector.shape_cast %140 : vector<8xf32> to vector<8x1xf32>
    %c0_87 = arith.constant 0 : index
    %c64_88 = arith.constant 64 : index
    %142 = vector.load %arg1[%c0_87, %c64_88] : memref<24x320xf32, #tpu.memory_space<vmem>>, vector<8x1xf32>
    %143 = arith.addf %141, %142 : vector<8x1xf32>
    %cst_89 = arith.constant 0.000000e+00 : f32
    %144 = vector.broadcast %cst_89 : f32 to vector<8x1xf32>
    %145 = arith.maximumf %143, %144 : vector<8x1xf32>
    %c0_90 = arith.constant 0 : index
    %c65 = arith.constant 65 : index
    %146 = vector.load %arg1[%c0_90, %c65] : memref<24x320xf32, #tpu.memory_space<vmem>>, vector<8x1xf32>
    %147 = arith.mulf %145, %146 : vector<8x1xf32>
    %cst_91 = arith.constant dense<0.000000e+00> : vector<1xf32>
    %148 = vector.multi_reduction <add>, %147, %cst_91 [0] : vector<8x1xf32> to vector<1xf32>
    %149 = vector.shape_cast %148 : vector<1xf32> to vector<1x1xf32>
    %c0_92 = arith.constant 0 : index
    %c66 = arith.constant 66 : index
    %150 = vector.load %arg1[%c0_92, %c66] : memref<24x320xf32, #tpu.memory_space<vmem>>, vector<1x1xf32>
    %151 = arith.addf %149, %150 : vector<1x1xf32>
    %c0_93 = arith.constant 0 : index
    %c0_94 = arith.constant 0 : index
    %152 = vector.load %arg5[%c0_93, %c0_94] : memref<1x1xf32, #tpu.memory_space<vmem>>, vector<1x1xf32>
    tpu.vector_store %arg5[%c0_93, %c0_94], %151 {strides = array<i32>} : memref<1x1xf32, #tpu.memory_space<vmem>>, vector<1x1xf32>,
    return
  }
}

</mosaic_0001>

<llo_original>
// kernel: critic_forward.1
$region0: #{critic_forward.1}
  #allocation0 [shape = 'u32[]', space=smem, size = 0x4, offset = 0x4, fixed_abs, tag = 'smem constant byte address 0x4 - core index']
  #allocation1 [shape = 'u32[144,128]{1,0:T(1,128)}', space=vmem, size = 0x12000, scoped, tag = 'internal scratch']
  #allocation2 [shape = 'f32[8,64]{1,0:T(8,128)}', space=vmem, size = 0x1000, scoped, tag = 'scratch operand']
  #allocation3 [shape = 'f32[1,512]{1,0:T(1,128)}', space=vmem, size = 0x800, scoped, tag = 'scratch operand']
  #allocation4 [shape = 'bf16[512,320]{1,0:T(8,128)(2,1)}', space=vmem, size = 0x60000, scoped, tag = 'scratch operand']
  #allocation5 [shape = 's32[1]{0}', space=sflag, size = 0x4, scoped, tag = 'scratch operand']
  #allocation10 [shape = 's32[]', space=sflag, size = 0x4, offset = 0, fixed_abs, tag = 'sflag constant byte address 0x0 - dummy sync flag']
  %s0 = inlined_call_operand.vmem [shape: f32[1,11], index: 0, kind: input, shape index: {}]
  %s1 = inlined_call_operand.vmem [shape: f32[24,320], index: 1, kind: input, shape index: {}]
  %s2 = inlined_call_operand.vmem [shape: bf16[192,128], index: 2, kind: input, shape index: {}]
  %s3 = inlined_call_operand.vmem [shape: bf16[320,64], index: 3, kind: input, shape index: {}]
  %s4 = inlined_call_operand.vmem [shape: bf16[512,320], index: 4, kind: input, shape index: {}]
  %s5 = inlined_call_operand.hbm [shape: f32[1,1], index: 5, kind: output, shape index: {}]
  %s6 = sld [smem:[#allocation0]]
  $region64: #{critic_forward.1} parent=0
    _
  %s8 = ssub.s32 1, %s6
  %s9 = scalar_select 0, %s8, %s6
  $region1: #{critic_forward.1} parent=0
    #allocation6 [shape = 'u8[512]{0}', space=smem, size = 0x200, scoped, tag = 'input window, operand 0, single buffered']
    #allocation7 [shape = 's32[1]{0}', space=sflag, size = 0x4, scoped, tag = 'scoped memory for critic_forward.1']
    #allocation8 [shape = 's32[1]{0}', space=sflag, size = 0x4, scoped, tag = 'scoped memory for critic_forward.1']
    #allocation9 [shape = 'u8[512]{0}', space=vmem, size = 0x400, scoped, tag = 'output window, operand 0, single buffered']
    %10 = vsyncpa [#allocation8], 0
    %11 = vsyncpa [#allocation7], 0
    // Predicated region
    $region2: #{critic_forward.1} parent=1 // pred_check
      _
    $region3: #{critic_forward.1} parent=1 // pred_check_branch
      %13 = sbr.rel (0) target = $region5
    $region4: #{critic_forward.1} parent=1 // pred_region
      %s15 = ssub.s32 16, 16
      %16 = vsyncadd [#allocation8], %s15
      %s18 = sshll.u32 %s0, 4
      %s19 = int_to_ptr.vmem [resolvable:$true] %s18
      %21 = dma.vmem_to_smem %s19, 16, [#allocation6], [#allocation8]
    $region5: #{critic_forward.1} parent=1 // pred_fallthru
      _
    // Predicated region
    $region6: #{critic_forward.1} parent=1 // pred_check
      _
    $region7: #{critic_forward.1} parent=1 // pred_check_branch
      %23 = sbr.rel (0) target = $region9
    $region8: #{critic_forward.1} parent=1 // pred_region
      _
    $region9: #{critic_forward.1} parent=1 // pred_fallthru
      _
    // Predicated region
    $region10: #{critic_forward.1} parent=1 // pred_check
      _
    $region11: #{critic_forward.1} parent=1 // pred_check_branch
      %25 = sbr.rel (0) target = $region13
    $region12: #{critic_forward.1} parent=1 // pred_region
      _
    $region13: #{critic_forward.1} parent=1 // pred_fallthru
      _
    // Predicated region
    $region14: #{critic_forward.1} parent=1 // pred_check
      _
    $region15: #{critic_forward.1} parent=1 // pred_check_branch
      %27 = sbr.rel (0) target = $region17
    $region16: #{critic_forward.1} parent=1 // pred_region
      _
    $region17: #{critic_forward.1} parent=1 // pred_fallthru
      _
    // Predicated region
    $region18: #{critic_forward.1} parent=1 // pred_check
      _
    $region19: #{critic_forward.1} parent=1 // pred_check_branch
      %29 = sbr.rel (0) target = $region21
    $region20: #{critic_forward.1} parent=1 // pred_region
      %30 = dma.done [#allocation8], 16
    $region21: #{critic_forward.1} parent=1 // pred_fallthru
      _
    %31 = sfence
    %p34 = scmp.lt.u32.totalorder 768, 8
    %p35 = pneg %p34
    // Predicated region
    $region22: #{critic_forward.1} parent=1 // pred_check
      _
    $region23: #{critic_forward.1} parent=1 // pred_check_branch
      %37 = sbr.rel (%p34) target = $region25
    $region24: #{critic_forward.1} parent=1 // pred_region
      %s53 = sand.u32 768, 7
      %p54 = scmp.eq.s32.totalorder %s53, 0
      // Predicated region
      $region37: #{critic_forward.1} parent=24 // pred_check
        %p55 = pneg %p54
      $region38: #{critic_forward.1} parent=24 // pred_check_branch
        %57 = sbr.rel (%p55) target = $region40
      $region39: #{critic_forward.1} parent=24 // pred_region
        loop: start=0, step=1, limit=1
        $region41: #{critic_forward.1} parent=39 // loop_pre_header
          _
        $region42: #{critic_forward.1} parent=39 // loop_header
          %s59 = sphi 0, %s63
          %p60 = scmp.ge.s32.totalorder %s59, 1
          %s64 = sphi %s4, %s4
          %s65 = sphi [#allocation4], [#allocation4]
        $region43: #{critic_forward.1} parent=39 // loop_header_branch
          %62 = sbr.rel (%p60) target = $region47
        $region44: #{critic_forward.1} parent=39 // loop_body
          %v66 = vld [vmem:[%s64] sm:$0xff]
          %67 = vst [vmem:[%s65] sm:$0xff] %v66
          %v68 = vld [vmem:[%s64 + $0x8] sm:$0xff]
          %69 = vst [vmem:[%s65 + $0x8] sm:$0xff] %v68
          %v70 = vld [vmem:[%s64 + $0x10] sm:$0xff]
          %71 = vst [vmem:[%s65 + $0x10] sm:$0xff] %v70
          %v72 = vld [vmem:[%s64 + $0x18] sm:$0xff]
          %73 = vst [vmem:[%s65 + $0x18] sm:$0xff] %v72
          %v74 = vld [vmem:[%s64 + $0x20] sm:$0xff]
          %75 = vst [vmem:[%s65 + $0x20] sm:$0xff] %v74
          %v76 = vld [vmem:[%s64 + $0x28] sm:$0xff]
          %77 = vst [vmem:[%s65 + $0x28] sm:$0xff] %v76
          %v78 = vld [vmem:[%s64 + $0x30] sm:$0xff]
          %79 = vst [vmem:[%s65 + $0x30] sm:$0xff] %v78
          %v80 = vld [vmem:[%s64 + $0x38] sm:$0xff]
          %81 = vst [vmem:[%s65 + $0x38] sm:$0xff] %v80
          %v82 = vld [vmem:[%s64 + $0x40] sm:$0xff]
          %83 = vst [vmem:[%s65 + $0x40] sm:$0xff] %v82
          %v84 = vld [vmem:[%s64 + $0x48] sm:$0xff]
          %85 = vst [vmem:[%s65 + $0x48] sm:$0xff] %v84
          %v86 = vld [vmem:[%s64 + $0x50] sm:$0xff]
          %87 = vst [vmem:[%s65 + $0x50] sm:$0xff] %v86
          %v88 = vld [vmem:[%s64 + $0x58] sm:$0xff]
          %89 = vst [vmem:[%s65 + $0x58] sm:$0xff] %v88
          %v90 = vld [vmem:[%s64 + $0x60] sm:$0xff]
          %91 = vst [vmem:[%s65 + $0x60] sm:$0xff] %v90
          %v92 = vld [vmem:[%s64 + $0x68] sm:$0xff]
          %93 = vst [vmem:[%s65 + $0x68] sm:$0xff] %v92
          %v94 = vld [vmem:[%s64 + $0x70] sm:$0xff]
          %95 = vst [vmem:[%s65 + $0x70] sm:$0xff] %v94
          %v96 = vld [vmem:[%s64 + $0x78] sm:$0xff]
          %97 = vst [vmem:[%s65 + $0x78] sm:$0xff] %v96
          %v98 = vld [vmem:[%s64 + $0x80] sm:$0xff]
          %99 = vst [vmem:[%s65 + $0x80] sm:$0xff] %v98
          %v100 = vld [vmem:[%s64 + $0x88] sm:$0xff]
          %101 = vst [vmem:[%s65 + $0x88] sm:$0xff] %v100
          %v102 = vld [vmem:[%s64 + $0x90] sm:$0xff]
          %103 = vst [vmem:[%s65 + $0x90] sm:$0xff] %v102
          %v104 = vld [vmem:[%s64 + $0x98] sm:$0xff]
          %105 = vst [vmem:[%s65 + $0x98] sm:$0xff] %v104
          %v106 = vld [vmem:[%s64 + $0xa0] sm:$0xff]
          %107 = vst [vmem:[%s65 + $0xa0] sm:$0xff] %v106
          %v108 = vld [vmem:[%s64 + $0xa8] sm:$0xff]
          %109 = vst [vmem:[%s65 + $0xa8] sm:$0xff] %v108
          %v110 = vld [vmem:[%s64 + $0xb0] sm:$0xff]
          %111 = vst [vmem:[%s65 + $0xb0] sm:$0xff] %v110
          %v112 = vld [vmem:[%s64 + $0xb8] sm:$0xff]
          %113 = vst [vmem:[%s65 + $0xb8] sm:$0xff] %v112
          %v114 = vld [vmem:[%s64 + $0xc0] sm:$0xff]
          %115 = vst [vmem:[%s65 + $0xc0] sm:$0xff] %v114
          %v116 = vld [vmem:[%s64 + $0xc8] sm:$0xff]
          %117 = vst [vmem:[%s65 + $0xc8] sm:$0xff] %v116
          %v118 = vld [vmem:[%s64 + $0xd0] sm:$0xff]
          %119 = vst [vmem:[%s65 + $0xd0] sm:$0xff] %v118
          %v120 = vld [vmem:[%s64 + $0xd8] sm:$0xff]
          %121 = vst [vmem:[%s65 + $0xd8] sm:$0xff] %v120
          %v122 = vld [vmem:[%s64 + $0xe0] sm:$0xff]
          %123 = vst [vmem:[%s65 + $0xe0] sm:$0xff] %v122
          %v124 = vld [vmem:[%s64 + $0xe8] sm:$0xff]
          %125 = vst [vmem:[%s65 + $0xe8] sm:$0xff] %v124
          %v126 = vld [vmem:[%s64 + $0xf0] sm:$0xff]
          %127 = vst [vmem:[%s65 + $0xf0] sm:$0xff] %v126
          %v128 = vld [vmem:[%s64 + $0xf8] sm:$0xff]
          %129 = vst [vmem:[%s65 + $0xf8] sm:$0xff] %v128
          %v130 = vld [vmem:[%s64 + $0x100] sm:$0xff]
          %131 = vst [vmem:[%s65 + $0x100] sm:$0xff] %v130
          %v132 = vld [vmem:[%s64 + $0x108] sm:$0xff]
          %133 = vst [vmem:[%s65 + $0x108] sm:$0xff] %v132
          %v134 = vld [vmem:[%s64 + $0x110] sm:$0xff]
          %135 = vst [vmem:[%s65 + $0x110] sm:$0xff] %v134
          %v136 = vld [vmem:[%s64 + $0x118] sm:$0xff]
          %137 = vst [vmem:[%s65 + $0x118] sm:$0xff] %v136
          %v138 = vld [vmem:[%s64 + $0x120] sm:$0xff]
          %139 = vst [vmem:[%s65 + $0x120] sm:$0xff] %v138
          %v140 = vld [vmem:[%s64 + $0x128] sm:$0xff]
          %141 = vst [vmem:[%s65 + $0x128] sm:$0xff] %v140
          %v142 = vld [vmem:[%s64 + $0x130] sm:$0xff]
          %143 = vst [vmem:[%s65 + $0x130] sm:$0xff] %v142
          %v144 = vld [vmem:[%s64 + $0x138] sm:$0xff]
          %145 = vst [vmem:[%s65 + $0x138] sm:$0xff] %v144
          %v146 = vld [vmem:[%s64 + $0x140] sm:$0xff]
          %147 = vst [vmem:[%s65 + $0x140] sm:$0xff] %v146
          %v148 = vld [vmem:[%s64 + $0x148] sm:$0xff]
          %149 = vst [vmem:[%s65 + $0x148] sm:$0xff] %v148
          %v150 = vld [vmem:[%s64 + $0x150] sm:$0xff]
          %151 = vst [vmem:[%s65 + $0x150] sm:$0xff] %v150
          %v152 = vld [vmem:[%s64 + $0x158] sm:$0xff]
          %153 = vst [vmem:[%s65 + $0x158] sm:$0xff] %v152
          %v154 = vld [vmem:[%s64 + $0x160] sm:$0xff]
          %155 = vst [vmem:[%s65 + $0x160] sm:$0xff] %v154
          %v156 = vld [vmem:[%s64 + $0x168] sm:$0xff]
          %157 = vst [vmem:[%s65 + $0x168] sm:$0xff] %v156
          %v158 = vld [vmem:[%s64 + $0x170] sm:$0xff]
          %159 = vst [vmem:[%s65 + $0x170] sm:$0xff] %v158
          %v160 = vld [vmem:[%s64 + $0x178] sm:$0xff]
          %161 = vst [vmem:[%s65 + $0x178] sm:$0xff] %v160
          %v162 = vld [vmem:[%s64 + $0x180] sm:$0xff]
          %163 = vst [vmem:[%s65 + $0x180] sm:$0xff] %v162
          %v164 = vld [vmem:[%s64 + $0x188] sm:$0xff]
          %165 = vst [vmem:[%s65 + $0x188] sm:$0xff] %v164
          %v166 = vld [vmem:[%s64 + $0x190] sm:$0xff]
          %167 = vst [vmem:[%s65 + $0x190] sm:$0xff] %v166
          %v168 = vld [vmem:[%s64 + $0x198] sm:$0xff]
          %169 = vst [vmem:[%s65 + $0x198] sm:$0xff] %v168
          %v170 = vld [vmem:[%s64 + $0x1a0] sm:$0xff]
          %171 = vst [vmem:[%s65 + $0x1a0] sm:$0xff] %v170
          %v172 = vld [vmem:[%s64 + $0x1a8] sm:$0xff]
          %173 = vst [vmem:[%s65 + $0x1a8] sm:$0xff] %v172
          %v174 = vld [vmem:[%s64 + $0x1b0] sm:$0xff]
          %175 = vst [vmem:[%s65 + $0x1b0] sm:$0xff] %v174
          %v176 = vld [vmem:[%s64 + $0x1b8] sm:$0xff]
          %177 = vst [vmem:[%s65 + $0x1b8] sm:$0xff] %v176
          %v178 = vld [vmem:[%s64 + $0x1c0] sm:$0xff]
          %179 = vst [vmem:[%s65 + $0x1c0] sm:$0xff] %v178
          %v180 = vld [vmem:[%s64 + $0x1c8] sm:$0xff]
          %181 = vst [vmem:[%s65 + $0x1c8] sm:$0xff] %v180
          %v182 = vld [vmem:[%s64 + $0x1d0] sm:$0xff]
          %183 = vst [vmem:[%s65 + $0x1d0] sm:$0xff] %v182
          %v184 = vld [vmem:[%s64 + $0x1d8] sm:$0xff]
          %185 = vst [vmem:[%s65 + $0x1d8] sm:$0xff] %v184
          %v186 = vld [vmem:[%s64 + $0x1e0] sm:$0xff]
          %187 = vst [vmem:[%s65 + $0x1e0] sm:$0xff] %v186
          %v188 = vld [vmem:[%s64 + $0x1e8] sm:$0xff]
          %189 = vst [vmem:[%s65 + $0x1e8] sm:$0xff] %v188
          %v190 = vld [vmem:[%s64 + $0x1f0] sm:$0xff]
          %191 = vst [vmem:[%s65 + $0x1f0] sm:$0xff] %v190
          %v192 = vld [vmem:[%s64 + $0x1f8] sm:$0xff]
          %193 = vst [vmem:[%s65 + $0x1f8] sm:$0xff] %v192
          %v194 = vld [vmem:[%s64 + $0x200] sm:$0xff]
          %195 = vst [vmem:[%s65 + $0x200] sm:$0xff] %v194
          %v196 = vld [vmem:[%s64 + $0x208] sm:$0xff]
          %197 = vst [vmem:[%s65 + $0x208] sm:$0xff] %v196
          %v198 = vld [vmem:[%s64 + $0x210] sm:$0xff]
          %199 = vst [vmem:[%s65 + $0x210] sm:$0xff] %v198
          %v200 = vld [vmem:[%s64 + $0x218] sm:$0xff]
          %201 = vst [vmem:[%s65 + $0x218] sm:$0xff] %v200
          %v202 = vld [vmem:[%s64 + $0x220] sm:$0xff]
          %203 = vst [vmem:[%s65 + $0x220] sm:$0xff] %v202
          %v204 = vld [vmem:[%s64 + $0x228] sm:$0xff]
          %205 = vst [vmem:[%s65 + $0x228] sm:$0xff] %v204
          %v206 = vld [vmem:[%s64 + $0x230] sm:$0xff]
          %207 = vst [vmem:[%s65 + $0x230] sm:$0xff] %v206
          %v208 = vld [vmem:[%s64 + $0x238] sm:$0xff]
          %209 = vst [vmem:[%s65 + $0x238] sm:$0xff] %v208
          %v210 = vld [vmem:[%s64 + $0x240] sm:$0xff]
          %211 = vst [vmem:[%s65 + $0x240] sm:$0xff] %v210
          %v212 = vld [vmem:[%s64 + $0x248] sm:$0xff]
          %213 = vst [vmem:[%s65 + $0x248] sm:$0xff] %v212
          %v214 = vld [vmem:[%s64 + $0x250] sm:$0xff]
          %215 = vst [vmem:[%s65 + $0x250] sm:$0xff] %v214
          %v216 = vld [vmem:[%s64 + $0x258] sm:$0xff]
          %217 = vst [vmem:[%s65 + $0x258] sm:$0xff] %v216
          %v218 = vld [vmem:[%s64 + $0x260] sm:$0xff]
          %219 = vst [vmem:[%s65 + $0x260] sm:$0xff] %v218
          %v220 = vld [vmem:[%s64 + $0x268] sm:$0xff]
          %221 = vst [vmem:[%s65 + $0x268] sm:$0xff] %v220
          %v222 = vld [vmem:[%s64 + $0x270] sm:$0xff]
          %223 = vst [vmem:[%s65 + $0x270] sm:$0xff] %v222
          %v224 = vld [vmem:[%s64 + $0x278] sm:$0xff]
          %225 = vst [vmem:[%s65 + $0x278] sm:$0xff] %v224
          %v226 = vld [vmem:[%s64 + $0x280] sm:$0xff]
          %227 = vst [vmem:[%s65 + $0x280] sm:$0xff] %v226
          %v228 = vld [vmem:[%s64 + $0x288] sm:$0xff]
          %229 = vst [vmem:[%s65 + $0x288] sm:$0xff] %v228
          %v230 = vld [vmem:[%s64 + $0x290] sm:$0xff]
          %231 = vst [vmem:[%s65 + $0x290] sm:$0xff] %v230
          %v232 = vld [vmem:[%s64 + $0x298] sm:$0xff]
          %233 = vst [vmem:[%s65 + $0x298] sm:$0xff] %v232
          %v234 = vld [vmem:[%s64 + $0x2a0] sm:$0xff]
          %235 = vst [vmem:[%s65 + $0x2a0] sm:$0xff] %v234
          %v236 = vld [vmem:[%s64 + $0x2a8] sm:$0xff]
          %237 = vst [vmem:[%s65 + $0x2a8] sm:$0xff] %v236
          %v238 = vld [vmem:[%s64 + $0x2b0] sm:$0xff]
          %239 = vst [vmem:[%s65 + $0x2b0] sm:$0xff] %v238
          %v240 = vld [vmem:[%s64 + $0x2b8] sm:$0xff]
          %241 = vst [vmem:[%s65 + $0x2b8] sm:$0xff] %v240
          %v242 = vld [vmem:[%s64 + $0x2c0] sm:$0xff]
          %243 = vst [vmem:[%s65 + $0x2c0] sm:$0xff] %v242
          %v244 = vld [vmem:[%s64 + $0x2c8] sm:$0xff]
          %245 = vst [vmem:[%s65 + $0x2c8] sm:$0xff] %v244
          %v246 = vld [vmem:[%s64 + $0x2d0] sm:$0xff]
          %247 = vst [vmem:[%s65 + $0x2d0] sm:$0xff] %v246
          %v248 = vld [vmem:[%s64 + $0x2d8] sm:$0xff]
          %249 = vst [vmem:[%s65 + $0x2d8] sm:$0xff] %v248
          %v250 = vld [vmem:[%s64 + $0x2e0] sm:$0xff]
          %251 = vst [vmem:[%s65 + $0x2e0] sm:$0xff] %v250
          %v252 = vld [vmem:[%s64 + $0x2e8] sm:$0xff]
          %253 = vst [vmem:[%s65 + $0x2e8] sm:$0xff] %v252
          %v254 = vld [vmem:[%s64 + $0x2f0] sm:$0xff]
          %255 = vst [vmem:[%s65 + $0x2f0] sm:$0xff] %v254
          %v256 = vld [vmem:[%s64 + $0x2f8] sm:$0xff]
          %257 = vst [vmem:[%s65 + $0x2f8] sm:$0xff] %v256
        $region45: #{critic_forward.1} parent=39 // loop_footer
          %s63 = sadd.s32 1, %s59
        $region46: #{critic_forward.1} parent=39 // loop_footer_branch
          %58 = sbr.rel target = $region42
        $region47: #{critic_forward.1} parent=39 // loop_exit
          _
      $region40: #{critic_forward.1} parent=24 // pred_fallthru
        _
      %p258 = pneg %p54
      // Predicated region
      $region48: #{critic_forward.1} parent=24 // pred_check
        _
      $region49: #{critic_forward.1} parent=24 // pred_check_branch
        %260 = sbr.rel (%p54) target = $region51
      $region50: #{critic_forward.1} parent=24 // pred_region
        %s261 = sand.u32 768, 7
      $region51: #{critic_forward.1} parent=24 // pred_fallthru
        _
    $region25: #{critic_forward.1} parent=1 // pred_fallthru
      _
    // Predicated region
    $region26: #{critic_forward.1} parent=1 // pred_check
      %p38 = pneg %p34
    $region27: #{critic_forward.1} parent=1 // pred_check_branch
      %40 = sbr.rel (%p38) target = $region29
    $region28: #{critic_forward.1} parent=1 // pred_region
      %s41 = sshll.u32 1, 768
      %s42 = ssub.s32 %s41, 1
      loop: start=0, step=1, limit=1
      $region30: #{critic_forward.1} parent=28 // loop_pre_header
        _
      $region31: #{critic_forward.1} parent=28 // loop_header
        %s44 = sphi 0, %s48
        %p45 = scmp.ge.s32.totalorder %s44, 1
        %s49 = sphi %s4, %s4
        %s50 = sphi [#allocation4], [#allocation4]
      $region32: #{critic_forward.1} parent=28 // loop_header_branch
        %47 = sbr.rel (%p45) target = $region36
      $region33: #{critic_forward.1} parent=28 // loop_body
        %v51 = vld [vmem:[%s49] sm:%s42]
        %52 = vst [vmem:[%s50] sm:%s42] %v51
      $region34: #{critic_forward.1} parent=28 // loop_footer
        %s48 = sadd.s32 1, %s44
      $region35: #{critic_forward.1} parent=28 // loop_footer_branch
        %43 = sbr.rel target = $region31
      $region36: #{critic_forward.1} parent=28 // loop_exit
        _
    $region29: #{critic_forward.1} parent=1 // pred_fallthru
      _
    // Predicated region
    $region52: #{critic_forward.1} parent=1 // pred_check
      _
    $region53: #{critic_forward.1} parent=1 // pred_check_branch
      %264 = sbr.rel (0) target = $region55
    $region54: #{critic_forward.1} parent=1 // pred_region
      %265 = vsyncadd [#allocation5], 12288
    $region55: #{critic_forward.1} parent=1 // pred_fallthru
      _
    %s266 = sld [smem:[#allocation6]]
    %s267 = sld [smem:[#allocation6 + $0x1]]
    %s268 = sld [smem:[#allocation6 + $0x2]]
    %v269 = vld [vmem:[%s1 + $0x18] ss:$0 sm:$0xff]
    %v270 = vld [vmem:[%s1 + $0x1b] ss:$0 sm:$0xff]
    %v271 = vld [vmem:[%s1 + $0x1c] ss:$0 sm:$0xff]
    %v272 = vld [vmem:[%s1 + $0x1d] ss:$0 sm:$0xff]
    %s273 = sld [smem:[#allocation6 + $0x3]]
    %v274 = vstv %s273
    %v275 = vmul.f32 %v274, %v270
    %v276 = vadd.f32 %v269, %v275
    %s277 = sld [smem:[#allocation6 + $0x4]]
    %v278 = vstv %s277
    %v279 = vmul.f32 %v278, %v271
    %v280 = vadd.f32 %v276, %v279
    %s281 = sld [smem:[#allocation6 + $0x5]]
    %v282 = vstv %s281
    %v283 = vmul.f32 %v282, %v272
    %v284 = vadd.f32 %v280, %v283
    %vm285 = vcmask 516096
    %286 = vst.msk [vmem:[#allocation2] sm:$0x1] %vm285, %v284
    %s287 = sld [smem:[#allocation6 + $0x4]]
    %v288 = vstv %s287
    %v289 = vmul.f32 %v288, %v270
    %v290 = vadd.f32 %v269, %v289
    %s291 = sld [smem:[#allocation6 + $0x5]]
    %v292 = vstv %s291
    %v293 = vmul.f32 %v292, %v271
    %v294 = vadd.f32 %v290, %v293
    %s295 = sld [smem:[#allocation6 + $0x6]]
    %v296 = vstv %s295
    %v297 = vmul.f32 %v296, %v272
    %v298 = vadd.f32 %v294, %v297
    %299 = vst.msk [vmem:[#allocation2 + $0x1] sm:$0x1] %vm285, %v298
    %s300 = sld [smem:[#allocation6 + $0x5]]
    %v301 = vstv %s300
    %v302 = vmul.f32 %v301, %v270
    %v303 = vadd.f32 %v269, %v302
    %s304 = sld [smem:[#allocation6 + $0x6]]
    %v305 = vstv %s304
    %v306 = vmul.f32 %v305, %v271
    %v307 = vadd.f32 %v303, %v306
    %s308 = sld [smem:[#allocation6 + $0x7]]
    %v309 = vstv %s308
    %v310 = vmul.f32 %v309, %v272
    %v311 = vadd.f32 %v307, %v310
    %312 = vst.msk [vmem:[#allocation2 + $0x2] sm:$0x1] %vm285, %v311
    %s313 = sld [smem:[#allocation6 + $0x6]]
    %v314 = vstv %s313
    %v315 = vmul.f32 %v314, %v270
    %v316 = vadd.f32 %v269, %v315
    %s317 = sld [smem:[#allocation6 + $0x7]]
    %v318 = vstv %s317
    %v319 = vmul.f32 %v318, %v271
    %v320 = vadd.f32 %v316, %v319
    %s321 = sld [smem:[#allocation6 + $0x8]]
    %v322 = vstv %s321
    %v323 = vmul.f32 %v322, %v272
    %v324 = vadd.f32 %v320, %v323
    %325 = vst.msk [vmem:[#allocation2 + $0x3] sm:$0x1] %vm285, %v324
    %s326 = sld [smem:[#allocation6 + $0x7]]
    %v327 = vstv %s326
    %v328 = vmul.f32 %v327, %v270
    %v329 = vadd.f32 %v269, %v328
    %s330 = sld [smem:[#allocation6 + $0x8]]
    %v331 = vstv %s330
    %v332 = vmul.f32 %v331, %v271
    %v333 = vadd.f32 %v329, %v332
    %s334 = sld [smem:[#allocation6 + $0x9]]
    %v335 = vstv %s334
    %v336 = vmul.f32 %v335, %v272
    %v337 = vadd.f32 %v333, %v336
    %338 = vst.msk [vmem:[#allocation2 + $0x4] sm:$0x1] %vm285, %v337
    %s339 = sld [smem:[#allocation6 + $0x8]]
    %v340 = vstv %s339
    %v341 = vmul.f32 %v340, %v270
    %v342 = vadd.f32 %v269, %v341
    %s343 = sld [smem:[#allocation6 + $0x9]]
    %v344 = vstv %s343
    %v345 = vmul.f32 %v344, %v271
    %v346 = vadd.f32 %v342, %v345
    %s347 = sld [smem:[#allocation6 + $0xa]]
    %v348 = vstv %s347
    %v349 = vmul.f32 %v348, %v272
    %v350 = vadd.f32 %v346, %v349
    %351 = vst.msk [vmem:[#allocation2 + $0x5] sm:$0x1] %vm285, %v350
    %v352 = vld [vmem:[%s1 + $0x19] ss:$0 sm:$0xff]
    %v353 = vld [vmem:[#allocation2] sm:$0xf]
    %v354 = vpack.c.bf16 %v353, %v353
    %v355 = vld [vmem:[%s2] sm:$0xf]
    %v356 = vld [vmem:[%s2 + $0x4] sm:$0xf]
    %v357 = vld [vmem:[%s2 + $0x8] sm:$0xf]
    %v358 = vld [vmem:[%s2 + $0xc] sm:$0xf]
    %v359 = vld [vmem:[%s2 + $0x10] sm:$0xf]
    %v360 = vld [vmem:[%s2 + $0x14] sm:$0xf]
    %v361 = vld [vmem:[%s2 + $0x18] sm:$0xf]
    %v362 = vld [vmem:[%s2 + $0x1c] sm:$0xf]
    %v371 = vunpack.c.l.b16 %v355
    %v372 = vunpack.c.l.b16 %v356
    %v373 = vunpack.c.l.b16 %v357
    %v374 = vunpack.c.l.b16 %v358
    %v375 = vunpack.c.l.b16 %v359
    %v376 = vunpack.c.l.b16 %v360
    %v377 = vunpack.c.l.b16 %v361
    %v378 = vunpack.c.l.b16 %v362
    %v379 = vpack.c.b16 %v372, %v371
    %v380 = vpack.c.b16 %v374, %v373
    %v381 = vpack.c.b16 %v376, %v375
    %v382 = vpack.c.b16 %v378, %v377
    %vm387 = vcmask 523264
    %v389 = vsel %vm387, %v354, 0
    %391 = vmatprep.subr.bf16.mxu0 0
    %392 = vmatpush1.bf16.msra.mxu0 0
    %393 = vmatprep.subr.bf16.mxu0 0
    %394 = vmatpush1.bf16.msra.mxu0 0
    %395 = vmatprep.subr.bf16.mxu0 0
    %396 = vmatpush1.bf16.msra.mxu0 0
    %397 = vmatprep.subr.bf16.mxu0 0
    %398 = vmatpush1.bf16.msra.mxu0 0
    %399 = vmatprep.subr.bf16.mxu0 0
    %400 = vmatpush1.bf16.msra.mxu0 %v382
    %401 = vmatprep.subr.bf16.mxu0 0
    %402 = vmatpush1.bf16.msra.mxu0 %v381
    %403 = vmatprep.subr.bf16.mxu0 0
    %404 = vmatpush1.bf16.msra.mxu0 %v380
    %405 = vmatprep.subr.bf16.mxu0 0
    %406 = vmatpush1.bf16.msra.mxu0 %v379
    %407 = vmatprep.subr.bf16.mxu0 0
    %408 = vmatpush2.bf16.msra.mxu0 0
    %409 = vmatprep.subr.bf16.mxu0 0
    %410 = vmatpush2.bf16.msra.mxu0 0
    %411 = vmatprep.subr.bf16.mxu0 0
    %412 = vmatpush2.bf16.msra.mxu0 0
    %413 = vmatprep.subr.bf16.mxu0 0
    %414 = vmatpush2.bf16.msra.mxu0 0
    %415 = vmatprep.subr.bf16.mxu0 0
    %416 = vmatpush2.bf16.msra.mxu0 0
    %417 = vmatprep.subr.bf16.mxu0 0
    %418 = vmatpush2.bf16.msra.mxu0 0
    %419 = vmatprep.subr.bf16.mxu0 0
    %420 = vmatpush2.bf16.msra.mxu0 0
    %421 = vmatprep.subr.bf16.mxu0 0
    %422 = vmatpush2.bf16.msra.mxu0 0
    %423 = vmatprep.mubr.bf16.mxu0 0
    %424 = vmatmul.mubr.bf16.gmra.mxu0 %v389
    %v425 = vpop.f32.mrf.mxu0
    %v426 = vadd.f32 0.0, %v425
    %v427 = vpop.f32.mrf.mxu0
    %v428 = vpop.f32.mrf.mxu0
    %v429 = vpop.f32.mrf.mxu0
    %430 = vdwg.mxu0
    %v431 = vadd.f32 %v352, %v426
    %v432 = vld [vmem:[#allocation2 + $0x1] sm:$0xf]
    %v433 = vpack.c.bf16 %v432, %v432
    %v434 = vld [vmem:[%s2 + $0x20] sm:$0xf]
    %v435 = vld [vmem:[%s2 + $0x24] sm:$0xf]
    %v436 = vld [vmem:[%s2 + $0x28] sm:$0xf]
    %v437 = vld [vmem:[%s2 + $0x2c] sm:$0xf]
    %v438 = vld [vmem:[%s2 + $0x30] sm:$0xf]
    %v439 = vld [vmem:[%s2 + $0x34] sm:$0xf]
    %v440 = vld [vmem:[%s2 + $0x38] sm:$0xf]
    %v441 = vld [vmem:[%s2 + $0x3c] sm:$0xf]
    %v450 = vunpack.c.l.b16 %v434
    %v451 = vunpack.c.l.b16 %v435
    %v452 = vunpack.c.l.b16 %v436
    %v453 = vunpack.c.l.b16 %v437
    %v454 = vunpack.c.l.b16 %v438
    %v455 = vunpack.c.l.b16 %v439
    %v456 = vunpack.c.l.b16 %v440
    %v457 = vunpack.c.l.b16 %v441
    %v458 = vpack.c.b16 %v451, %v450
    %v459 = vpack.c.b16 %v453, %v452
    %v460 = vpack.c.b16 %v455, %v454
    %v461 = vpack.c.b16 %v457, %v456
    %v467 = vsel %vm387, %v433, 0
    %469 = vmatprep.subr.bf16.mxu0 0
    %470 = vmatpush1.bf16.msra.mxu0 0
    %471 = vmatprep.subr.bf16.mxu0 0
    %472 = vmatpush1.bf16.msra.mxu0 0
    %473 = vmatprep.subr.bf16.mxu0 0
    %474 = vmatpush1.bf16.msra.mxu0 0
    %475 = vmatprep.subr.bf16.mxu0 0
    %476 = vmatpush1.bf16.msra.mxu0 0
    %477 = vmatprep.subr.bf16.mxu0 0
    %478 = vmatpush1.bf16.msra.mxu0 %v461
    %479 = vmatprep.subr.bf16.mxu0 0
    %480 = vmatpush1.bf16.msra.mxu0 %v460
    %481 = vmatprep.subr.bf16.mxu0 0
    %482 = vmatpush1.bf16.msra.mxu0 %v459
    %483 = vmatprep.subr.bf16.mxu0 0
    %484 = vmatpush1.bf16.msra.mxu0 %v458
    %485 = vmatprep.subr.bf16.mxu0 0
    %486 = vmatpush2.bf16.msra.mxu0 0
    %487 = vmatprep.subr.bf16.mxu0 0
    %488 = vmatpush2.bf16.msra.mxu0 0
    %489 = vmatprep.subr.bf16.mxu0 0
    %490 = vmatpush2.bf16.msra.mxu0 0
    %491 = vmatprep.subr.bf16.mxu0 0
    %492 = vmatpush2.bf16.msra.mxu0 0
    %493 = vmatprep.subr.bf16.mxu0 0
    %494 = vmatpush2.bf16.msra.mxu0 0
    %495 = vmatprep.subr.bf16.mxu0 0
    %496 = vmatpush2.bf16.msra.mxu0 0
    %497 = vmatprep.subr.bf16.mxu0 0
    %498 = vmatpush2.bf16.msra.mxu0 0
    %499 = vmatprep.subr.bf16.mxu0 0
    %500 = vmatpush2.bf16.msra.mxu0 0
    %501 = vmatprep.mubr.bf16.mxu0 0
    %502 = vmatmul.mubr.bf16.gmra.mxu0 %v467
    %v503 = vpop.f32.mrf.mxu0
    %v504 = vadd.f32 0.0, %v503
    %v505 = vpop.f32.mrf.mxu0
    %v506 = vpop.f32.mrf.mxu0
    %v507 = vpop.f32.mrf.mxu0
    %508 = vdwg.mxu0
    %v509 = vadd.f32 %v431, %v504
    %v510 = vld [vmem:[#allocation2 + $0x2] sm:$0xf]
    %v511 = vpack.c.bf16 %v510, %v510
    %v512 = vld [vmem:[%s2 + $0x40] sm:$0xf]
    %v513 = vld [vmem:[%s2 + $0x44] sm:$0xf]
    %v514 = vld [vmem:[%s2 + $0x48] sm:$0xf]
    %v515 = vld [vmem:[%s2 + $0x4c] sm:$0xf]
    %v516 = vld [vmem:[%s2 + $0x50] sm:$0xf]
    %v517 = vld [vmem:[%s2 + $0x54] sm:$0xf]
    %v518 = vld [vmem:[%s2 + $0x58] sm:$0xf]
    %v519 = vld [vmem:[%s2 + $0x5c] sm:$0xf]
    %v528 = vunpack.c.l.b16 %v512
    %v529 = vunpack.c.l.b16 %v513
    %v530 = vunpack.c.l.b16 %v514
    %v531 = vunpack.c.l.b16 %v515
    %v532 = vunpack.c.l.b16 %v516
    %v533 = vunpack.c.l.b16 %v517
    %v534 = vunpack.c.l.b16 %v518
    %v535 = vunpack.c.l.b16 %v519
    %v536 = vpack.c.b16 %v529, %v528
    %v537 = vpack.c.b16 %v531, %v530
    %v538 = vpack.c.b16 %v533, %v532
    %v539 = vpack.c.b16 %v535, %v534
    %v545 = vsel %vm387, %v511, 0
    %547 = vmatprep.subr.bf16.mxu0 0
    %548 = vmatpush1.bf16.msra.mxu0 0
    %549 = vmatprep.subr.bf16.mxu0 0
    %550 = vmatpush1.bf16.msra.mxu0 0
    %551 = vmatprep.subr.bf16.mxu0 0
    %552 = vmatpush1.bf16.msra.mxu0 0
    %553 = vmatprep.subr.bf16.mxu0 0
    %554 = vmatpush1.bf16.msra.mxu0 0
    %555 = vmatprep.subr.bf16.mxu0 0
    %556 = vmatpush1.bf16.msra.mxu0 %v539
    %557 = vmatprep.subr.bf16.mxu0 0
    %558 = vmatpush1.bf16.msra.mxu0 %v538
    %559 = vmatprep.subr.bf16.mxu0 0
    %560 = vmatpush1.bf16.msra.mxu0 %v537
    %561 = vmatprep.subr.bf16.mxu0 0
    %562 = vmatpush1.bf16.msra.mxu0 %v536
    %563 = vmatprep.subr.bf16.mxu0 0
    %564 = vmatpush2.bf16.msra.mxu0 0
    %565 = vmatprep.subr.bf16.mxu0 0
    %566 = vmatpush2.bf16.msra.mxu0 0
    %567 = vmatprep.subr.bf16.mxu0 0
    %568 = vmatpush2.bf16.msra.mxu0 0
    %569 = vmatprep.subr.bf16.mxu0 0
    %570 = vmatpush2.bf16.msra.mxu0 0
    %571 = vmatprep.subr.bf16.mxu0 0
    %572 = vmatpush2.bf16.msra.mxu0 0
    %573 = vmatprep.subr.bf16.mxu0 0
    %574 = vmatpush2.bf16.msra.mxu0 0
    %575 = vmatprep.subr.bf16.mxu0 0
    %576 = vmatpush2.bf16.msra.mxu0 0
    %577 = vmatprep.subr.bf16.mxu0 0
    %578 = vmatpush2.bf16.msra.mxu0 0
    %579 = vmatprep.mubr.bf16.mxu0 0
    %580 = vmatmul.mubr.bf16.gmra.mxu0 %v545
    %v581 = vpop.f32.mrf.mxu0
    %v582 = vadd.f32 0.0, %v581
    %v583 = vpop.f32.mrf.mxu0
    %v584 = vpop.f32.mrf.mxu0
    %v585 = vpop.f32.mrf.mxu0
    %586 = vdwg.mxu0
    %v587 = vadd.f32 %v509, %v582
    %v588 = vlaneseq
    %vm589 = vcmp.ge.s32.totalorder %v588, 0
    %vm590 = vcmp.lt.s32.totalorder %v588, 128
    %vm591 = vmand %vm589, %vm590
    %592 = vst.msk [vmem:[#allocation3] sm:$0x1] %vm591, %v587
    %v595 = vunpack.c.l.s4 1966171168
    %v596 = vunpack.c.0.s8 %v595
    %v597 = vlaneseq
    %v598 = vshrl.u32 %v597, 7
    %v599 = vsub.s32 %v596, %v598
    %v600 = vrot.slane %v587, %v599
    %v601 = vcombine.high %v600, %v600
    %v603 = vunpack.c.l.s4 1966171168
    %v604 = vunpack.c.0.s8 %v603
    %v605 = vlaneseq
    %v606 = vshrl.u32 %v605, 7
    %v607 = vsub.s32 %v604, %v606
    %v608 = vrot.slane %v600, %v607
    %v610 = vunpack.c.l.s4 1966171168
    %v611 = vunpack.c.0.s8 %v610
    %v612 = vlaneseq
    %v613 = vshrl.u32 %v612, 7
    %v614 = vsub.s32 %v611, %v613
    %v615 = vrot.slane %v601, %v614
    %617 = vst.msk [vmem:[#allocation3 + $0x1] sm:$0x1] %vm591, %v615
    %v618 = vcombine.high %v608, %v608
    %620 = vst.msk [vmem:[#allocation3 + $0x2] sm:$0x1] %vm591, %v618
    %v621 = vcombine.high %v615, %v615
    %623 = vst.msk [vmem:[#allocation3 + $0x3] sm:$0x1] %vm591, %v621
    %s624 = smul.u32 4, 64
    %s625 = smul.u32 %s624, 3
    %s626 = sshll.u32 %s625, 4
    %627 = dma.done [#allocation5], %s626
    %v628 = vld [vmem:[#allocation3] sm:$0xf]
    %v630 = vlaneseq
    %v631 = vshrl.u32 %v630, 7
    %v632 = vsub.s32 0, %v631
    %v633 = vrot.slane %v628, %v632
    %v634 = vlaneseq
    %v635 = vshrl.u32 %v634, 7
    %v636 = vsub.s32 1, %v635
    %v637 = vrot.slane %v628, %v636
    %v638 = vlaneseq
    %v639 = vshrl.u32 %v638, 7
    %v640 = vsub.s32 2, %v639
    %v641 = vrot.slane %v628, %v640
    %v642 = vlaneseq
    %v643 = vshrl.u32 %v642, 7
    %v644 = vsub.s32 3, %v643
    %v645 = vrot.slane %v628, %v644
    %v650 = vpack.c.bf16 %v633, %v633
    %v651 = vpack.c.bf16 %v637, %v637
    %v652 = vpack.c.bf16 %v641, %v641
    %v653 = vpack.c.bf16 %v645, %v645
    %v654 = vld [vmem:[#allocation4] sm:$0xff]
    %v655 = vld [vmem:[#allocation4 + $0x8] sm:$0xf]
    %v656 = vld [vmem:[#allocation4 + $0xc] sm:$0xff]
    %v657 = vld [vmem:[#allocation4 + $0x14] sm:$0xf]
    %v658 = vld [vmem:[#allocation4 + $0x18] sm:$0xff]
    %v659 = vld [vmem:[#allocation4 + $0x20] sm:$0xf]
    %v660 = vld [vmem:[#allocation4 + $0x24] sm:$0xff]
    %v661 = vld [vmem:[#allocation4 + $0x2c] sm:$0xf]
    %v662 = vld [vmem:[#allocation4 + $0x30] sm:$0xff]
    %v663 = vld [vmem:[#allocation4 + $0x38] sm:$0xf]
    %v664 = vld [vmem:[#allocation4 + $0x3c] sm:$0xff]
    %v665 = vld [vmem:[#allocation4 + $0x44] sm:$0xf]
    %v666 = vld [vmem:[#allocation4 + $0x48] sm:$0xff]
    %v667 = vld [vmem:[#allocation4 + $0x50] sm:$0xf]
    %v668 = vld [vmem:[#allocation4 + $0x54] sm:$0xff]
    %v669 = vld [vmem:[#allocation4 + $0x5c] sm:$0xf]
    %v670 = vld [vmem:[#allocation4 + $0x60] sm:$0xff]
    %v671 = vld [vmem:[#allocation4 + $0x68] sm:$0xf]
    %v672 = vld [vmem:[#allocation4 + $0x6c] sm:$0xff]
    %v673 = vld [vmem:[#allocation4 + $0x74] sm:$0xf]
    %v674 = vld [vmem:[#allocation4 + $0x78] sm:$0xff]
    %v675 = vld [vmem:[#allocation4 + $0x80] sm:$0xf]
    %v676 = vld [vmem:[#allocation4 + $0x84] sm:$0xff]
    %v677 = vld [vmem:[#allocation4 + $0x8c] sm:$0xf]
    %v678 = vld [vmem:[#allocation4 + $0x90] sm:$0xff]
    %v679 = vld [vmem:[#allocation4 + $0x98] sm:$0xf]
    %v680 = vld [vmem:[#allocation4 + $0x9c] sm:$0xff]
    %v681 = vld [vmem:[#allocation4 + $0xa4] sm:$0xf]
    %v682 = vld [vmem:[#allocation4 + $0xa8] sm:$0xff]
    %v683 = vld [vmem:[#allocation4 + $0xb0] sm:$0xf]
    %v684 = vld [vmem:[#allocation4 + $0xb4] sm:$0xff]
    %v685 = vld [vmem:[#allocation4 + $0xbc] sm:$0xf]
    %v686 = vld [vmem:[#allocation4 + $0xc0] sm:$0xff]
    %v687 = vld [vmem:[#allocation4 + $0xc8] sm:$0xf]
    %v688 = vld [vmem:[#allocation4 + $0xcc] sm:$0xff]
    %v689 = vld [vmem:[#allocation4 + $0xd4] sm:$0xf]
    %v690 = vld [vmem:[#allocation4 + $0xd8] sm:$0xff]
    %v691 = vld [vmem:[#allocation4 + $0xe0] sm:$0xf]
    %v692 = vld [vmem:[#allocation4 + $0xe4] sm:$0xff]
    %v693 = vld [vmem:[#allocation4 + $0xec] sm:$0xf]
    %v694 = vld [vmem:[#allocation4 + $0xf0] sm:$0xff]
    %v695 = vld [vmem:[#allocation4 + $0xf8] sm:$0xf]
    %v696 = vld [vmem:[#allocation4 + $0xfc] sm:$0xff]
    %v697 = vld [vmem:[#allocation4 + $0x104] sm:$0xf]
    %v698 = vld [vmem:[#allocation4 + $0x108] sm:$0xff]
    %v699 = vld [vmem:[#allocation4 + $0x110] sm:$0xf]
    %v700 = vld [vmem:[#allocation4 + $0x114] sm:$0xff]
    %v701 = vld [vmem:[#allocation4 + $0x11c] sm:$0xf]
    %v702 = vld [vmem:[#allocation4 + $0x120] sm:$0xff]
    %v703 = vld [vmem:[#allocation4 + $0x128] sm:$0xf]
    %v704 = vld [vmem:[#allocation4 + $0x12c] sm:$0xff]
    %v705 = vld [vmem:[#allocation4 + $0x134] sm:$0xf]
    %v706 = vld [vmem:[#allocation4 + $0x138] sm:$0xff]
    %v707 = vld [vmem:[#allocation4 + $0x140] sm:$0xf]
    %v708 = vld [vmem:[#allocation4 + $0x144] sm:$0xff]
    %v709 = vld [vmem:[#allocation4 + $0x14c] sm:$0xf]
    %v710 = vld [vmem:[#allocation4 + $0x150] sm:$0xff]
    %v711 = vld [vmem:[#allocation4 + $0x158] sm:$0xf]
    %v712 = vld [vmem:[#allocation4 + $0x15c] sm:$0xff]
    %v713 = vld [vmem:[#allocation4 + $0x164] sm:$0xf]
    %v714 = vld [vmem:[#allocation4 + $0x168] sm:$0xff]
    %v715 = vld [vmem:[#allocation4 + $0x170] sm:$0xf]
    %v716 = vld [vmem:[#allocation4 + $0x174] sm:$0xff]
    %v717 = vld [vmem:[#allocation4 + $0x17c] sm:$0xf]
    %v718 = vld [vmem:[#allocation4 + $0x180] sm:$0xff]
    %v719 = vld [vmem:[#allocation4 + $0x188] sm:$0xf]
    %v720 = vld [vmem:[#allocation4 + $0x18c] sm:$0xff]
    %v721 = vld [vmem:[#allocation4 + $0x194] sm:$0xf]
    %v722 = vld [vmem:[#allocation4 + $0x198] sm:$0xff]
    %v723 = vld [vmem:[#allocation4 + $0x1a0] sm:$0xf]
    %v724 = vld [vmem:[#allocation4 + $0x1a4] sm:$0xff]
    %v725 = vld [vmem:[#allocation4 + $0x1ac] sm:$0xf]
    %v726 = vld [vmem:[#allocation4 + $0x1b0] sm:$0xff]
    %v727 = vld [vmem:[#allocation4 + $0x1b8] sm:$0xf]
    %v728 = vld [vmem:[#allocation4 + $0x1bc] sm:$0xff]
    %v729 = vld [vmem:[#allocation4 + $0x1c4] sm:$0xf]
    %v730 = vld [vmem:[#allocation4 + $0x1c8] sm:$0xff]
    %v731 = vld [vmem:[#allocation4 + $0x1d0] sm:$0xf]
    %v732 = vld [vmem:[#allocation4 + $0x1d4] sm:$0xff]
    %v733 = vld [vmem:[#allocation4 + $0x1dc] sm:$0xf]
    %v734 = vld [vmem:[#allocation4 + $0x1e0] sm:$0xff]
    %v735 = vld [vmem:[#allocation4 + $0x1e8] sm:$0xf]
    %v736 = vld [vmem:[#allocation4 + $0x1ec] sm:$0xff]
    %v737 = vld [vmem:[#allocation4 + $0x1f4] sm:$0xf]
    %v738 = vld [vmem:[#allocation4 + $0x1f8] sm:$0xff]
    %v739 = vld [vmem:[#allocation4 + $0x200] sm:$0xf]
    %v740 = vld [vmem:[#allocation4 + $0x204] sm:$0xff]
    %v741 = vld [vmem:[#allocation4 + $0x20c] sm:$0xf]
    %v742 = vld [vmem:[#allocation4 + $0x210] sm:$0xff]
    %v743 = vld [vmem:[#allocation4 + $0x218] sm:$0xf]
    %v744 = vld [vmem:[#allocation4 + $0x21c] sm:$0xff]
    %v745 = vld [vmem:[#allocation4 + $0x224] sm:$0xf]
    %v746 = vld [vmem:[#allocation4 + $0x228] sm:$0xff]
    %v747 = vld [vmem:[#allocation4 + $0x230] sm:$0xf]
    %v748 = vld [vmem:[#allocation4 + $0x234] sm:$0xff]
    %v749 = vld [vmem:[#allocation4 + $0x23c] sm:$0xf]
    %v750 = vld [vmem:[#allocation4 + $0x240] sm:$0xff]
    %v751 = vld [vmem:[#allocation4 + $0x248] sm:$0xf]
    %v752 = vld [vmem:[#allocation4 + $0x24c] sm:$0xff]
    %v753 = vld [vmem:[#allocation4 + $0x254] sm:$0xf]
    %v754 = vld [vmem:[#allocation4 + $0x258] sm:$0xff]
    %v755 = vld [vmem:[#allocation4 + $0x260] sm:$0xf]
    %v756 = vld [vmem:[#allocation4 + $0x264] sm:$0xff]
    %v757 = vld [vmem:[#allocation4 + $0x26c] sm:$0xf]
    %v758 = vld [vmem:[#allocation4 + $0x270] sm:$0xff]
    %v759 = vld [vmem:[#allocation4 + $0x278] sm:$0xf]
    %v760 = vld [vmem:[#allocation4 + $0x27c] sm:$0xff]
    %v761 = vld [vmem:[#allocation4 + $0x284] sm:$0xf]
    %v762 = vld [vmem:[#allocation4 + $0x288] sm:$0xff]
    %v763 = vld [vmem:[#allocation4 + $0x290] sm:$0xf]
    %v764 = vld [vmem:[#allocation4 + $0x294] sm:$0xff]
    %v765 = vld [vmem:[#allocation4 + $0x29c] sm:$0xf]
    %v766 = vld [vmem:[#allocation4 + $0x2a0] sm:$0xff]
    %v767 = vld [vmem:[#allocation4 + $0x2a8] sm:$0xf]
    %v768 = vld [vmem:[#allocation4 + $0x2ac] sm:$0xff]
    %v769 = vld [vmem:[#allocation4 + $0x2b4] sm:$0xf]
    %v770 = vld [vmem:[#allocation4 + $0x2b8] sm:$0xff]
    %v771 = vld [vmem:[#allocation4 + $0x2c0] sm:$0xf]
    %v772 = vld [vmem:[#allocation4 + $0x2c4] sm:$0xff]
    %v773 = vld [vmem:[#allocation4 + $0x2cc] sm:$0xf]
    %v774 = vld [vmem:[#allocation4 + $0x2d0] sm:$0xff]
    %v775 = vld [vmem:[#allocation4 + $0x2d8] sm:$0xf]
    %v776 = vld [vmem:[#allocation4 + $0x2dc] sm:$0xff]
    %v777 = vld [vmem:[#allocation4 + $0x2e4] sm:$0xf]
    %v778 = vld [vmem:[#allocation4 + $0x2e8] sm:$0xff]
    %v779 = vld [vmem:[#allocation4 + $0x2f0] sm:$0xf]
    %v780 = vld [vmem:[#allocation4 + $0x2f4] sm:$0xff]
    %v781 = vld [vmem:[#allocation4 + $0x2fc] sm:$0xf]
    %s782 = scalar_lea.vmem %s1, 30
    %v783 = vld [vmem:[%s782] ss:$8 sm:$0x7]
    %v784 = vstv %s266
    %v785 = vmul.f32 %v784, %v783
    %v914 = vunpack.c.l.b16 %v654
    %v915 = vunpack.c.h.b16 %v654
    %v916 = vunpack.c.l.b16 %v655
    %v917 = vunpack.c.l.b16 %v656
    %v918 = vunpack.c.h.b16 %v656
    %v919 = vunpack.c.l.b16 %v657
    %v920 = vunpack.c.l.b16 %v658
    %v921 = vunpack.c.h.b16 %v658
    %v922 = vunpack.c.l.b16 %v659
    %v923 = vunpack.c.l.b16 %v660
    %v924 = vunpack.c.h.b16 %v660
    %v925 = vunpack.c.l.b16 %v661
    %v926 = vunpack.c.l.b16 %v662
    %v927 = vunpack.c.h.b16 %v662
    %v928 = vunpack.c.l.b16 %v663
    %v929 = vunpack.c.l.b16 %v664
    %v930 = vunpack.c.h.b16 %v664
    %v931 = vunpack.c.l.b16 %v665
    %v932 = vunpack.c.l.b16 %v666
    %v933 = vunpack.c.h.b16 %v666
    %v934 = vunpack.c.l.b16 %v667
    %v935 = vunpack.c.l.b16 %v668
    %v936 = vunpack.c.h.b16 %v668
    %v937 = vunpack.c.l.b16 %v669
    %v938 = vunpack.c.l.b16 %v670
    %v939 = vunpack.c.h.b16 %v670
    %v940 = vunpack.c.l.b16 %v671
    %v941 = vunpack.c.l.b16 %v672
    %v942 = vunpack.c.h.b16 %v672
    %v943 = vunpack.c.l.b16 %v673
    %v944 = vunpack.c.l.b16 %v674
    %v945 = vunpack.c.h.b16 %v674
    %v946 = vunpack.c.l.b16 %v675
    %v947 = vunpack.c.l.b16 %v676
    %v948 = vunpack.c.h.b16 %v676
    %v949 = vunpack.c.l.b16 %v677
    %v950 = vunpack.c.l.b16 %v678
    %v951 = vunpack.c.h.b16 %v678
    %v952 = vunpack.c.l.b16 %v679
    %v953 = vunpack.c.l.b16 %v680
    %v954 = vunpack.c.h.b16 %v680
    %v955 = vunpack.c.l.b16 %v681
    %v956 = vunpack.c.l.b16 %v682
    %v957 = vunpack.c.h.b16 %v682
    %v958 = vunpack.c.l.b16 %v683
    %v959 = vunpack.c.l.b16 %v684
    %v960 = vunpack.c.h.b16 %v684
    %v961 = vunpack.c.l.b16 %v685
    %v962 = vunpack.c.l.b16 %v686
    %v963 = vunpack.c.h.b16 %v686
    %v964 = vunpack.c.l.b16 %v687
    %v965 = vunpack.c.l.b16 %v688
    %v966 = vunpack.c.h.b16 %v688
    %v967 = vunpack.c.l.b16 %v689
    %v968 = vunpack.c.l.b16 %v690
    %v969 = vunpack.c.h.b16 %v690
    %v970 = vunpack.c.l.b16 %v691
    %v971 = vunpack.c.l.b16 %v692
    %v972 = vunpack.c.h.b16 %v692
    %v973 = vunpack.c.l.b16 %v693
    %v974 = vunpack.c.l.b16 %v694
    %v975 = vunpack.c.h.b16 %v694
    %v976 = vunpack.c.l.b16 %v695
    %v977 = vunpack.c.l.b16 %v696
    %v978 = vunpack.c.h.b16 %v696
    %v979 = vunpack.c.l.b16 %v697
    %v980 = vunpack.c.l.b16 %v698
    %v981 = vunpack.c.h.b16 %v698
    %v982 = vunpack.c.l.b16 %v699
    %v983 = vunpack.c.l.b16 %v700
    %v984 = vunpack.c.h.b16 %v700
    %v985 = vunpack.c.l.b16 %v701
    %v986 = vunpack.c.l.b16 %v702
    %v987 = vunpack.c.h.b16 %v702
    %v988 = vunpack.c.l.b16 %v703
    %v989 = vunpack.c.l.b16 %v704
    %v990 = vunpack.c.h.b16 %v704
    %v991 = vunpack.c.l.b16 %v705
    %v992 = vunpack.c.l.b16 %v706
    %v993 = vunpack.c.h.b16 %v706
    %v994 = vunpack.c.l.b16 %v707
    %v995 = vunpack.c.l.b16 %v708
    %v996 = vunpack.c.h.b16 %v708
    %v997 = vunpack.c.l.b16 %v709
    %v998 = vunpack.c.l.b16 %v710
    %v999 = vunpack.c.h.b16 %v710
    %v1000 = vunpack.c.l.b16 %v711
    %v1001 = vunpack.c.l.b16 %v712
    %v1002 = vunpack.c.h.b16 %v712
    %v1003 = vunpack.c.l.b16 %v713
    %v1004 = vunpack.c.l.b16 %v714
    %v1005 = vunpack.c.h.b16 %v714
    %v1006 = vunpack.c.l.b16 %v715
    %v1007 = vunpack.c.l.b16 %v716
    %v1008 = vunpack.c.h.b16 %v716
    %v1009 = vunpack.c.l.b16 %v717
    %v1010 = vunpack.c.l.b16 %v718
    %v1011 = vunpack.c.h.b16 %v718
    %v1012 = vunpack.c.l.b16 %v719
    %v1013 = vunpack.c.l.b16 %v720
    %v1014 = vunpack.c.h.b16 %v720
    %v1015 = vunpack.c.l.b16 %v721
    %v1016 = vunpack.c.l.b16 %v722
    %v1017 = vunpack.c.h.b16 %v722
    %v1018 = vunpack.c.l.b16 %v723
    %v1019 = vunpack.c.l.b16 %v724
    %v1020 = vunpack.c.h.b16 %v724
    %v1021 = vunpack.c.l.b16 %v725
    %v1022 = vunpack.c.l.b16 %v726
    %v1023 = vunpack.c.h.b16 %v726
    %v1024 = vunpack.c.l.b16 %v727
    %v1025 = vunpack.c.l.b16 %v728
    %v1026 = vunpack.c.h.b16 %v728
    %v1027 = vunpack.c.l.b16 %v729
    %v1028 = vunpack.c.l.b16 %v730
    %v1029 = vunpack.c.h.b16 %v730
    %v1030 = vunpack.c.l.b16 %v731
    %v1031 = vunpack.c.l.b16 %v732
    %v1032 = vunpack.c.h.b16 %v732
    %v1033 = vunpack.c.l.b16 %v733
    %v1034 = vunpack.c.l.b16 %v734
    %v1035 = vunpack.c.h.b16 %v734
    %v1036 = vunpack.c.l.b16 %v735
    %v1037 = vunpack.c.l.b16 %v736
    %v1038 = vunpack.c.h.b16 %v736
    %v1039 = vunpack.c.l.b16 %v737
    %v1040 = vunpack.c.l.b16 %v738
    %v1041 = vunpack.c.h.b16 %v738
    %v1042 = vunpack.c.l.b16 %v739
    %v1043 = vunpack.c.l.b16 %v740
    %v1044 = vunpack.c.h.b16 %v740
    %v1045 = vunpack.c.l.b16 %v741
    %v1046 = vunpack.c.l.b16 %v742
    %v1047 = vunpack.c.h.b16 %v742
    %v1048 = vunpack.c.l.b16 %v743
    %v1049 = vunpack.c.l.b16 %v744
    %v1050 = vunpack.c.h.b16 %v744
    %v1051 = vunpack.c.l.b16 %v745
    %v1052 = vunpack.c.l.b16 %v746
    %v1053 = vunpack.c.h.b16 %v746
    %v1054 = vunpack.c.l.b16 %v747
    %v1055 = vunpack.c.l.b16 %v748
    %v1056 = vunpack.c.h.b16 %v748
    %v1057 = vunpack.c.l.b16 %v749
    %v1058 = vunpack.c.l.b16 %v750
    %v1059 = vunpack.c.h.b16 %v750
    %v1060 = vunpack.c.l.b16 %v751
    %v1061 = vunpack.c.l.b16 %v752
    %v1062 = vunpack.c.h.b16 %v752
    %v1063 = vunpack.c.l.b16 %v753
    %v1064 = vunpack.c.l.b16 %v754
    %v1065 = vunpack.c.h.b16 %v754
    %v1066 = vunpack.c.l.b16 %v755
    %v1067 = vunpack.c.l.b16 %v756
    %v1068 = vunpack.c.h.b16 %v756
    %v1069 = vunpack.c.l.b16 %v757
    %v1070 = vunpack.c.l.b16 %v758
    %v1071 = vunpack.c.h.b16 %v758
    %v1072 = vunpack.c.l.b16 %v759
    %v1073 = vunpack.c.l.b16 %v760
    %v1074 = vunpack.c.h.b16 %v760
    %v1075 = vunpack.c.l.b16 %v761
    %v1076 = vunpack.c.l.b16 %v762
    %v1077 = vunpack.c.h.b16 %v762
    %v1078 = vunpack.c.l.b16 %v763
    %v1079 = vunpack.c.l.b16 %v764
    %v1080 = vunpack.c.h.b16 %v764
    %v1081 = vunpack.c.l.b16 %v765
    %v1082 = vunpack.c.l.b16 %v766
    %v1083 = vunpack.c.h.b16 %v766
    %v1084 = vunpack.c.l.b16 %v767
    %v1085 = vunpack.c.l.b16 %v768
    %v1086 = vunpack.c.h.b16 %v768
    %v1087 = vunpack.c.l.b16 %v769
    %v1088 = vunpack.c.l.b16 %v770
    %v1089 = vunpack.c.h.b16 %v770
    %v1090 = vunpack.c.l.b16 %v771
    %v1091 = vunpack.c.l.b16 %v772
    %v1092 = vunpack.c.h.b16 %v772
    %v1093 = vunpack.c.l.b16 %v773
    %v1094 = vunpack.c.l.b16 %v774
    %v1095 = vunpack.c.h.b16 %v774
    %v1096 = vunpack.c.l.b16 %v775
    %v1097 = vunpack.c.l.b16 %v776
    %v1098 = vunpack.c.h.b16 %v776
    %v1099 = vunpack.c.l.b16 %v777
    %v1100 = vunpack.c.l.b16 %v778
    %v1101 = vunpack.c.h.b16 %v778
    %v1102 = vunpack.c.l.b16 %v779
    %v1103 = vunpack.c.l.b16 %v780
    %v1104 = vunpack.c.h.b16 %v780
    %v1105 = vunpack.c.l.b16 %v781
    %v1106 = vpack.c.b16 %v917, %v914
    %v1107 = vpack.c.b16 %v918, %v915
    %v1108 = vpack.c.b16 %v919, %v916
    %v1109 = vpack.c.b16 %v923, %v920
    %v1110 = vpack.c.b16 %v924, %v921
    %v1111 = vpack.c.b16 %v925, %v922
    %v1112 = vpack.c.b16 %v929, %v926
    %v1113 = vpack.c.b16 %v930, %v927
    %v1114 = vpack.c.b16 %v931, %v928
    %v1115 = vpack.c.b16 %v935, %v932
    %v1116 = vpack.c.b16 %v936, %v933
    %v1117 = vpack.c.b16 %v937, %v934
    %v1118 = vpack.c.b16 %v941, %v938
    %v1119 = vpack.c.b16 %v942, %v939
    %v1120 = vpack.c.b16 %v943, %v940
    %v1121 = vpack.c.b16 %v947, %v944
    %v1122 = vpack.c.b16 %v948, %v945
    %v1123 = vpack.c.b16 %v949, %v946
    %v1124 = vpack.c.b16 %v953, %v950
    %v1125 = vpack.c.b16 %v954, %v951
    %v1126 = vpack.c.b16 %v955, %v952
    %v1127 = vpack.c.b16 %v959, %v956
    %v1128 = vpack.c.b16 %v960, %v957
    %v1129 = vpack.c.b16 %v961, %v958
    %v1130 = vpack.c.b16 %v965, %v962
    %v1131 = vpack.c.b16 %v966, %v963
    %v1132 = vpack.c.b16 %v967, %v964
    %v1133 = vpack.c.b16 %v971, %v968
    %v1134 = vpack.c.b16 %v972, %v969
    %v1135 = vpack.c.b16 %v973, %v970
    %v1136 = vpack.c.b16 %v977, %v974
    %v1137 = vpack.c.b16 %v978, %v975
    %v1138 = vpack.c.b16 %v979, %v976
    %v1139 = vpack.c.b16 %v983, %v980
    %v1140 = vpack.c.b16 %v984, %v981
    %v1141 = vpack.c.b16 %v985, %v982
    %v1142 = vpack.c.b16 %v989, %v986
    %v1143 = vpack.c.b16 %v990, %v987
    %v1144 = vpack.c.b16 %v991, %v988
    %v1145 = vpack.c.b16 %v995, %v992
    %v1146 = vpack.c.b16 %v996, %v993
    %v1147 = vpack.c.b16 %v997, %v994
    %v1148 = vpack.c.b16 %v1001, %v998
    %v1149 = vpack.c.b16 %v1002, %v999
    %v1150 = vpack.c.b16 %v1003, %v1000
    %v1151 = vpack.c.b16 %v1007, %v1004
    %v1152 = vpack.c.b16 %v1008, %v1005
    %v1153 = vpack.c.b16 %v1009, %v1006
    %v1154 = vpack.c.b16 %v1013, %v1010
    %v1155 = vpack.c.b16 %v1014, %v1011
    %v1156 = vpack.c.b16 %v1015, %v1012
    %v1157 = vpack.c.b16 %v1019, %v1016
    %v1158 = vpack.c.b16 %v1020, %v1017
    %v1159 = vpack.c.b16 %v1021, %v1018
    %v1160 = vpack.c.b16 %v1025, %v1022
    %v1161 = vpack.c.b16 %v1026, %v1023
    %v1162 = vpack.c.b16 %v1027, %v1024
    %v1163 = vpack.c.b16 %v1031, %v1028
    %v1164 = vpack.c.b16 %v1032, %v1029
    %v1165 = vpack.c.b16 %v1033, %v1030
    %v1166 = vpack.c.b16 %v1037, %v1034
    %v1167 = vpack.c.b16 %v1038, %v1035
    %v1168 = vpack.c.b16 %v1039, %v1036
    %v1169 = vpack.c.b16 %v1043, %v1040
    %v1170 = vpack.c.b16 %v1044, %v1041
    %v1171 = vpack.c.b16 %v1045, %v1042
    %v1172 = vpack.c.b16 %v1049, %v1046
    %v1173 = vpack.c.b16 %v1050, %v1047
    %v1174 = vpack.c.b16 %v1051, %v1048
    %v1175 = vpack.c.b16 %v1055, %v1052
    %v1176 = vpack.c.b16 %v1056, %v1053
    %v1177 = vpack.c.b16 %v1057, %v1054
    %v1178 = vpack.c.b16 %v1061, %v1058
    %v1179 = vpack.c.b16 %v1062, %v1059
    %v1180 = vpack.c.b16 %v1063, %v1060
    %v1181 = vpack.c.b16 %v1067, %v1064
    %v1182 = vpack.c.b16 %v1068, %v1065
    %v1183 = vpack.c.b16 %v1069, %v1066
    %v1184 = vpack.c.b16 %v1073, %v1070
    %v1185 = vpack.c.b16 %v1074, %v1071
    %v1186 = vpack.c.b16 %v1075, %v1072
    %v1187 = vpack.c.b16 %v1079, %v1076
    %v1188 = vpack.c.b16 %v1080, %v1077
    %v1189 = vpack.c.b16 %v1081, %v1078
    %v1190 = vpack.c.b16 %v1085, %v1082
    %v1191 = vpack.c.b16 %v1086, %v1083
    %v1192 = vpack.c.b16 %v1087, %v1084
    %v1193 = vpack.c.b16 %v1091, %v1088
    %v1194 = vpack.c.b16 %v1092, %v1089
    %v1195 = vpack.c.b16 %v1093, %v1090
    %v1196 = vpack.c.b16 %v1097, %v1094
    %v1197 = vpack.c.b16 %v1098, %v1095
    %v1198 = vpack.c.b16 %v1099, %v1096
    %v1199 = vpack.c.b16 %v1103, %v1100
    %v1200 = vpack.c.b16 %v1104, %v1101
    %v1201 = vpack.c.b16 %v1105, %v1102
    %v1299 = vlaneseq
    %v1300 = vshrl.u32 %v1299, 7
    %v1301 = vsub.s32 0, %v1300
    %v1302 = vrot.slane %v785, %v1301
    %v1303 = vlaneseq
    %v1304 = vshrl.u32 %v1303, 7
    %v1305 = vsub.s32 1, %v1304
    %v1306 = vrot.slane %v785, %v1305
    %v1307 = vlaneseq
    %v1308 = vshrl.u32 %v1307, 7
    %v1309 = vsub.s32 2, %v1308
    %v1310 = vrot.slane %v785, %v1309
    %1314 = vmatprep.subr.bf16.mxu0 %v1128
    %1315 = vmatpush1.bf16.msra.mxu0 %v1127
    %1316 = vmatprep.subr.bf16.mxu0 %v1125
    %1317 = vmatpush1.bf16.msra.mxu0 %v1124
    %1318 = vmatprep.subr.bf16.mxu0 %v1122
    %1319 = vmatpush1.bf16.msra.mxu0 %v1121
    %1320 = vmatprep.subr.bf16.mxu0 %v1119
    %1321 = vmatpush1.bf16.msra.mxu0 %v1118
    %1322 = vmatprep.subr.bf16.mxu0 %v1116
    %1323 = vmatpush1.bf16.msra.mxu0 %v1115
    %1324 = vmatprep.subr.bf16.mxu0 %v1113
    %1325 = vmatpush1.bf16.msra.mxu0 %v1112
    %1326 = vmatprep.subr.bf16.mxu0 %v1110
    %1327 = vmatpush1.bf16.msra.mxu0 %v1109
    %1328 = vmatprep.subr.bf16.mxu0 %v1107
    %1329 = vmatpush1.bf16.msra.mxu0 %v1106
    %1330 = vmatprep.subr.bf16.mxu0 %v1152
    %1331 = vmatpush2.bf16.msra.mxu0 %v1151
    %1332 = vmatprep.subr.bf16.mxu0 %v1149
    %1333 = vmatpush2.bf16.msra.mxu0 %v1148
    %1334 = vmatprep.subr.bf16.mxu0 %v1146
    %1335 = vmatpush2.bf16.msra.mxu0 %v1145
    %1336 = vmatprep.subr.bf16.mxu0 %v1143
    %1337 = vmatpush2.bf16.msra.mxu0 %v1142
    %1338 = vmatprep.subr.bf16.mxu0 %v1140
    %1339 = vmatpush2.bf16.msra.mxu0 %v1139
    %1340 = vmatprep.subr.bf16.mxu0 %v1137
    %1341 = vmatpush2.bf16.msra.mxu0 %v1136
    %1342 = vmatprep.subr.bf16.mxu0 %v1134
    %1343 = vmatpush2.bf16.msra.mxu0 %v1133
    %1344 = vmatprep.subr.bf16.mxu0 %v1131
    %1345 = vmatpush2.bf16.msra.mxu0 %v1130
    %1346 = vmatprep.mubr.bf16.mxu0 %v651
    %1347 = vmatmul.mubr.bf16.gmra.mxu0 %v650
    %v1348 = vpop.f32.mrf.mxu0
    %v1349 = vadd.f32 %v1302, %v1348
    %v1350 = vpop.f32.mrf.mxu0
    %v1351 = vadd.f32 %v1306, %v1350
    %v1352 = vpop.f32.mrf.mxu0
    %v1353 = vpop.f32.mrf.mxu0
    %1354 = vdwg.mxu0
    %1355 = vmatprep.subr.bf16.mxu0 %v1176
    %1356 = vmatpush1.bf16.msra.mxu0 %v1175
    %1357 = vmatprep.subr.bf16.mxu0 %v1173
    %1358 = vmatpush1.bf16.msra.mxu0 %v1172
    %1359 = vmatprep.subr.bf16.mxu0 %v1170
    %1360 = vmatpush1.bf16.msra.mxu0 %v1169
    %1361 = vmatprep.subr.bf16.mxu0 %v1167
    %1362 = vmatpush1.bf16.msra.mxu0 %v1166
    %1363 = vmatprep.subr.bf16.mxu0 %v1164
    %1364 = vmatpush1.bf16.msra.mxu0 %v1163
    %1365 = vmatprep.subr.bf16.mxu0 %v1161
    %1366 = vmatpush1.bf16.msra.mxu0 %v1160
    %1367 = vmatprep.subr.bf16.mxu0 %v1158
    %1368 = vmatpush1.bf16.msra.mxu0 %v1157
    %1369 = vmatprep.subr.bf16.mxu0 %v1155
    %1370 = vmatpush1.bf16.msra.mxu0 %v1154
    %1371 = vmatprep.subr.bf16.mxu0 %v1200
    %1372 = vmatpush2.bf16.msra.mxu0 %v1199
    %1373 = vmatprep.subr.bf16.mxu0 %v1197
    %1374 = vmatpush2.bf16.msra.mxu0 %v1196
    %1375 = vmatprep.subr.bf16.mxu0 %v1194
    %1376 = vmatpush2.bf16.msra.mxu0 %v1193
    %1377 = vmatprep.subr.bf16.mxu0 %v1191
    %1378 = vmatpush2.bf16.msra.mxu0 %v1190
    %1379 = vmatprep.subr.bf16.mxu0 %v1188
    %1380 = vmatpush2.bf16.msra.mxu0 %v1187
    %1381 = vmatprep.subr.bf16.mxu0 %v1185
    %1382 = vmatpush2.bf16.msra.mxu0 %v1184
    %1383 = vmatprep.subr.bf16.mxu0 %v1182
    %1384 = vmatpush2.bf16.msra.mxu0 %v1181
    %1385 = vmatprep.subr.bf16.mxu0 %v1179
    %1386 = vmatpush2.bf16.msra.mxu0 %v1178
    %1387 = vmatprep.mubr.bf16.mxu0 %v653
    %1388 = vmatmul.mubr.bf16.gmra.mxu0 %v652
    %v1389 = vpop.f32.mrf.mxu0
    %v1390 = vadd.f32 %v1349, %v1389
    %v1391 = vpop.f32.mrf.mxu0
    %v1392 = vadd.f32 %v1351, %v1391
    %v1393 = vpop.f32.mrf.mxu0
    %v1394 = vpop.f32.mrf.mxu0
    %1395 = vdwg.mxu0
    %1396 = vmatprep.subr.bf16.mxu0 0
    %1397 = vmatpush1.bf16.msra.mxu0 %v1129
    %1398 = vmatprep.subr.bf16.mxu0 0
    %1399 = vmatpush1.bf16.msra.mxu0 %v1126
    %1400 = vmatprep.subr.bf16.mxu0 0
    %1401 = vmatpush1.bf16.msra.mxu0 %v1123
    %1402 = vmatprep.subr.bf16.mxu0 0
    %1403 = vmatpush1.bf16.msra.mxu0 %v1120
    %1404 = vmatprep.subr.bf16.mxu0 0
    %1405 = vmatpush1.bf16.msra.mxu0 %v1117
    %1406 = vmatprep.subr.bf16.mxu0 0
    %1407 = vmatpush1.bf16.msra.mxu0 %v1114
    %1408 = vmatprep.subr.bf16.mxu0 0
    %1409 = vmatpush1.bf16.msra.mxu0 %v1111
    %1410 = vmatprep.subr.bf16.mxu0 0
    %1411 = vmatpush1.bf16.msra.mxu0 %v1108
    %1412 = vmatprep.subr.bf16.mxu0 0
    %1413 = vmatpush2.bf16.msra.mxu0 %v1153
    %1414 = vmatprep.subr.bf16.mxu0 0
    %1415 = vmatpush2.bf16.msra.mxu0 %v1150
    %1416 = vmatprep.subr.bf16.mxu0 0
    %1417 = vmatpush2.bf16.msra.mxu0 %v1147
    %1418 = vmatprep.subr.bf16.mxu0 0
    %1419 = vmatpush2.bf16.msra.mxu0 %v1144
    %1420 = vmatprep.subr.bf16.mxu0 0
    %1421 = vmatpush2.bf16.msra.mxu0 %v1141
    %1422 = vmatprep.subr.bf16.mxu0 0
    %1423 = vmatpush2.bf16.msra.mxu0 %v1138
    %1424 = vmatprep.subr.bf16.mxu0 0
    %1425 = vmatpush2.bf16.msra.mxu0 %v1135
    %1426 = vmatprep.subr.bf16.mxu0 0
    %1427 = vmatpush2.bf16.msra.mxu0 %v1132
    %1428 = vmatprep.mubr.bf16.mxu0 %v651
    %1429 = vmatmul.mubr.bf16.gmra.mxu0 %v650
    %v1430 = vpop.f32.mrf.mxu0
    %v1431 = vadd.f32 %v1310, %v1430
    %v1432 = vpop.f32.mrf.mxu0
    %v1433 = vpop.f32.mrf.mxu0
    %v1434 = vpop.f32.mrf.mxu0
    %1435 = vdwg.mxu0
    %1436 = vmatprep.subr.bf16.mxu0 0
    %1437 = vmatpush1.bf16.msra.mxu0 %v1177
    %1438 = vmatprep.subr.bf16.mxu0 0
    %1439 = vmatpush1.bf16.msra.mxu0 %v1174
    %1440 = vmatprep.subr.bf16.mxu0 0
    %1441 = vmatpush1.bf16.msra.mxu0 %v1171
    %1442 = vmatprep.subr.bf16.mxu0 0
    %1443 = vmatpush1.bf16.msra.mxu0 %v1168
    %1444 = vmatprep.subr.bf16.mxu0 0
    %1445 = vmatpush1.bf16.msra.mxu0 %v1165
    %1446 = vmatprep.subr.bf16.mxu0 0
    %1447 = vmatpush1.bf16.msra.mxu0 %v1162
    %1448 = vmatprep.subr.bf16.mxu0 0
    %1449 = vmatpush1.bf16.msra.mxu0 %v1159
    %1450 = vmatprep.subr.bf16.mxu0 0
    %1451 = vmatpush1.bf16.msra.mxu0 %v1156
    %1452 = vmatprep.subr.bf16.mxu0 0
    %1453 = vmatpush2.bf16.msra.mxu0 %v1201
    %1454 = vmatprep.subr.bf16.mxu0 0
    %1455 = vmatpush2.bf16.msra.mxu0 %v1198
    %1456 = vmatprep.subr.bf16.mxu0 0
    %1457 = vmatpush2.bf16.msra.mxu0 %v1195
    %1458 = vmatprep.subr.bf16.mxu0 0
    %1459 = vmatpush2.bf16.msra.mxu0 %v1192
    %1460 = vmatprep.subr.bf16.mxu0 0
    %1461 = vmatpush2.bf16.msra.mxu0 %v1189
    %1462 = vmatprep.subr.bf16.mxu0 0
    %1463 = vmatpush2.bf16.msra.mxu0 %v1186
    %1464 = vmatprep.subr.bf16.mxu0 0
    %1465 = vmatpush2.bf16.msra.mxu0 %v1183
    %1466 = vmatprep.subr.bf16.mxu0 0
    %1467 = vmatpush2.bf16.msra.mxu0 %v1180
    %1468 = vmatprep.mubr.bf16.mxu0 %v653
    %1469 = vmatmul.mubr.bf16.gmra.mxu0 %v652
    %v1470 = vpop.f32.mrf.mxu0
    %v1471 = vadd.f32 %v1431, %v1470
    %v1472 = vpop.f32.mrf.mxu0
    %v1473 = vpop.f32.mrf.mxu0
    %v1474 = vpop.f32.mrf.mxu0
    %1475 = vdwg.mxu0
    %s1476 = scalar_lea.vmem %s1, 31
    %v1477 = vld [vmem:[%s1476] ss:$8 sm:$0x7]
    %v1478 = vstv %s267
    %v1479 = vmul.f32 %v1478, %v1477
    %v1481 = vlaneseq
    %v1482 = vshrl.u32 %v1481, 7
    %v1483 = vsub.s32 0, %v1482
    %v1484 = vrot.slane %v1479, %v1483
    %v1485 = vlaneseq
    %v1486 = vshrl.u32 %v1485, 7
    %v1487 = vsub.s32 1, %v1486
    %v1488 = vrot.slane %v1479, %v1487
    %v1489 = vlaneseq
    %v1490 = vshrl.u32 %v1489, 7
    %v1491 = vsub.s32 2, %v1490
    %v1492 = vrot.slane %v1479, %v1491
    %v1496 = vadd.f32 %v1390, %v1484
    %v1497 = vadd.f32 %v1392, %v1488
    %v1498 = vadd.f32 %v1471, %v1492
    %s1499 = scalar_lea.vmem %s1, 48
    %v1500 = vld [vmem:[%s1499] ss:$8 sm:$0x7]
    %v1501 = vstv %s268
    %v1502 = vmul.f32 %v1501, %v1500
    %v1504 = vlaneseq
    %v1505 = vshrl.u32 %v1504, 7
    %v1506 = vsub.s32 0, %v1505
    %v1507 = vrot.slane %v1502, %v1506
    %v1508 = vlaneseq
    %v1509 = vshrl.u32 %v1508, 7
    %v1510 = vsub.s32 1, %v1509
    %v1511 = vrot.slane %v1502, %v1510
    %v1512 = vlaneseq
    %v1513 = vshrl.u32 %v1512, 7
    %v1514 = vsub.s32 2, %v1513
    %v1515 = vrot.slane %v1502, %v1514
    %v1519 = vadd.f32 %v1496, %v1507
    %v1520 = vadd.f32 %v1497, %v1511
    %v1521 = vadd.f32 %v1498, %v1515
    %s1522 = scalar_lea.vmem %s1, 49
    %v1523 = vld [vmem:[%s1522] ss:$8 sm:$0x7]
    %v1525 = vlaneseq
    %v1526 = vshrl.u32 %v1525, 7
    %v1527 = vsub.s32 0, %v1526
    %v1528 = vrot.slane %v1523, %v1527
    %v1529 = vlaneseq
    %v1530 = vshrl.u32 %v1529, 7
    %v1531 = vsub.s32 1, %v1530
    %v1532 = vrot.slane %v1523, %v1531
    %v1533 = vlaneseq
    %v1534 = vshrl.u32 %v1533, 7
    %v1535 = vsub.s32 2, %v1534
    %v1536 = vrot.slane %v1523, %v1535
    %v1540 = vadd.f32 %v1519, %v1528
    %v1541 = vadd.f32 %v1520, %v1532
    %v1542 = vadd.f32 %v1521, %v1536
    %v1543 = vmax.f32 %v1540, 0.0
    %v1544 = vmax.f32 %v1541, 0.0
    %v1545 = vmax.f32 %v1542, 0.0
    %v1546 = vpack.c.bf16 %v1543, %v1543
    %v1547 = vpack.c.bf16 %v1544, %v1544
    %v1548 = vpack.c.bf16 %v1545, %v1545
    %v1549 = vld [vmem:[%s3] sm:$0xf]
    %v1550 = vld [vmem:[%s3 + $0x4] sm:$0xf]
    %v1551 = vld [vmem:[%s3 + $0x8] sm:$0xf]
    %v1552 = vld [vmem:[%s3 + $0xc] sm:$0xf]
    %v1553 = vld [vmem:[%s3 + $0x10] sm:$0xf]
    %v1554 = vld [vmem:[%s3 + $0x14] sm:$0xf]
    %v1555 = vld [vmem:[%s3 + $0x18] sm:$0xf]
    %v1556 = vld [vmem:[%s3 + $0x1c] sm:$0xf]
    %v1557 = vld [vmem:[%s3 + $0x20] sm:$0xf]
    %v1558 = vld [vmem:[%s3 + $0x24] sm:$0xf]
    %v1559 = vld [vmem:[%s3 + $0x28] sm:$0xf]
    %v1560 = vld [vmem:[%s3 + $0x2c] sm:$0xf]
    %v1561 = vld [vmem:[%s3 + $0x30] sm:$0xf]
    %v1562 = vld [vmem:[%s3 + $0x34] sm:$0xf]
    %v1563 = vld [vmem:[%s3 + $0x38] sm:$0xf]
    %v1564 = vld [vmem:[%s3 + $0x3c] sm:$0xf]
    %v1565 = vld [vmem:[%s3 + $0x40] sm:$0xf]
    %v1566 = vld [vmem:[%s3 + $0x44] sm:$0xf]
    %v1567 = vld [vmem:[%s3 + $0x48] sm:$0xf]
    %v1568 = vld [vmem:[%s3 + $0x4c] sm:$0xf]
    %v1569 = vld [vmem:[%s3 + $0x50] sm:$0xf]
    %v1570 = vld [vmem:[%s3 + $0x54] sm:$0xf]
    %v1571 = vld [vmem:[%s3 + $0x58] sm:$0xf]
    %v1572 = vld [vmem:[%s3 + $0x5c] sm:$0xf]
    %v1573 = vld [vmem:[%s3 + $0x60] sm:$0xf]
    %v1574 = vld [vmem:[%s3 + $0x64] sm:$0xf]
    %v1575 = vld [vmem:[%s3 + $0x68] sm:$0xf]
    %v1576 = vld [vmem:[%s3 + $0x6c] sm:$0xf]
    %v1577 = vld [vmem:[%s3 + $0x70] sm:$0xf]
    %v1578 = vld [vmem:[%s3 + $0x74] sm:$0xf]
    %v1579 = vld [vmem:[%s3 + $0x78] sm:$0xf]
    %v1580 = vld [vmem:[%s3 + $0x7c] sm:$0xf]
    %v1581 = vld [vmem:[%s3 + $0x80] sm:$0xf]
    %v1582 = vld [vmem:[%s3 + $0x84] sm:$0xf]
    %v1583 = vld [vmem:[%s3 + $0x88] sm:$0xf]
    %v1584 = vld [vmem:[%s3 + $0x8c] sm:$0xf]
    %v1585 = vld [vmem:[%s3 + $0x90] sm:$0xf]
    %v1586 = vld [vmem:[%s3 + $0x94] sm:$0xf]
    %v1587 = vld [vmem:[%s3 + $0x98] sm:$0xf]
    %v1588 = vld [vmem:[%s3 + $0x9c] sm:$0xf]
    %v1589 = vld [vmem:[%s1 + $0x1a] ss:$0 sm:$0xff]
    %v1630 = vunpack.c.l.b16 %v1549
    %v1631 = vunpack.c.l.b16 %v1550
    %v1632 = vunpack.c.l.b16 %v1551
    %v1633 = vunpack.c.l.b16 %v1552
    %v1634 = vunpack.c.l.b16 %v1553
    %v1635 = vunpack.c.l.b16 %v1554
    %v1636 = vunpack.c.l.b16 %v1555
    %v1637 = vunpack.c.l.b16 %v1556
    %v1638 = vunpack.c.l.b16 %v1557
    %v1639 = vunpack.c.l.b16 %v1558
    %v1640 = vunpack.c.l.b16 %v1559
    %v1641 = vunpack.c.l.b16 %v1560
    %v1642 = vunpack.c.l.b16 %v1561
    %v1643 = vunpack.c.l.b16 %v1562
    %v1644 = vunpack.c.l.b16 %v1563
    %v1645 = vunpack.c.l.b16 %v1564
    %v1646 = vunpack.c.l.b16 %v1565
    %v1647 = vunpack.c.l.b16 %v1566
    %v1648 = vunpack.c.l.b16 %v1567
    %v1649 = vunpack.c.l.b16 %v1568
    %v1650 = vunpack.c.l.b16 %v1569
    %v1651 = vunpack.c.l.b16 %v1570
    %v1652 = vunpack.c.l.b16 %v1571
    %v1653 = vunpack.c.l.b16 %v1572
    %v1654 = vunpack.c.l.b16 %v1573
    %v1655 = vunpack.c.l.b16 %v1574
    %v1656 = vunpack.c.l.b16 %v1575
    %v1657 = vunpack.c.l.b16 %v1576
    %v1658 = vunpack.c.l.b16 %v1577
    %v1659 = vunpack.c.l.b16 %v1578
    %v1660 = vunpack.c.l.b16 %v1579
    %v1661 = vunpack.c.l.b16 %v1580
    %v1662 = vunpack.c.l.b16 %v1581
    %v1663 = vunpack.c.l.b16 %v1582
    %v1664 = vunpack.c.l.b16 %v1583
    %v1665 = vunpack.c.l.b16 %v1584
    %v1666 = vunpack.c.l.b16 %v1585
    %v1667 = vunpack.c.l.b16 %v1586
    %v1668 = vunpack.c.l.b16 %v1587
    %v1669 = vunpack.c.l.b16 %v1588
    %v1670 = vpack.c.b16 %v1631, %v1630
    %v1671 = vpack.c.b16 %v1633, %v1632
    %v1672 = vpack.c.b16 %v1635, %v1634
    %v1673 = vpack.c.b16 %v1637, %v1636
    %v1674 = vpack.c.b16 %v1639, %v1638
    %v1675 = vpack.c.b16 %v1641, %v1640
    %v1676 = vpack.c.b16 %v1643, %v1642
    %v1677 = vpack.c.b16 %v1645, %v1644
    %v1678 = vpack.c.b16 %v1647, %v1646
    %v1679 = vpack.c.b16 %v1649, %v1648
    %v1680 = vpack.c.b16 %v1651, %v1650
    %v1681 = vpack.c.b16 %v1653, %v1652
    %v1682 = vpack.c.b16 %v1655, %v1654
    %v1683 = vpack.c.b16 %v1657, %v1656
    %v1684 = vpack.c.b16 %v1659, %v1658
    %v1685 = vpack.c.b16 %v1661, %v1660
    %v1686 = vpack.c.b16 %v1663, %v1662
    %v1687 = vpack.c.b16 %v1665, %v1664
    %v1688 = vpack.c.b16 %v1667, %v1666
    %v1689 = vpack.c.b16 %v1669, %v1668
    %v1711 = vsel %vm387, %v1548, 0
    %1713 = vmatprep.subr.bf16.mxu0 0
    %1714 = vmatpush1.bf16.msra.mxu0 %v1677
    %1715 = vmatprep.subr.bf16.mxu0 0
    %1716 = vmatpush1.bf16.msra.mxu0 %v1676
    %1717 = vmatprep.subr.bf16.mxu0 0
    %1718 = vmatpush1.bf16.msra.mxu0 %v1675
    %1719 = vmatprep.subr.bf16.mxu0 0
    %1720 = vmatpush1.bf16.msra.mxu0 %v1674
    %1721 = vmatprep.subr.bf16.mxu0 0
    %1722 = vmatpush1.bf16.msra.mxu0 %v1673
    %1723 = vmatprep.subr.bf16.mxu0 0
    %1724 = vmatpush1.bf16.msra.mxu0 %v1672
    %1725 = vmatprep.subr.bf16.mxu0 0
    %1726 = vmatpush1.bf16.msra.mxu0 %v1671
    %1727 = vmatprep.subr.bf16.mxu0 0
    %1728 = vmatpush1.bf16.msra.mxu0 %v1670
    %1729 = vmatprep.subr.bf16.mxu0 0
    %1730 = vmatpush2.bf16.msra.mxu0 %v1685
    %1731 = vmatprep.subr.bf16.mxu0 0
    %1732 = vmatpush2.bf16.msra.mxu0 %v1684
    %1733 = vmatprep.subr.bf16.mxu0 0
    %1734 = vmatpush2.bf16.msra.mxu0 %v1683
    %1735 = vmatprep.subr.bf16.mxu0 0
    %1736 = vmatpush2.bf16.msra.mxu0 %v1682
    %1737 = vmatprep.subr.bf16.mxu0 0
    %1738 = vmatpush2.bf16.msra.mxu0 %v1681
    %1739 = vmatprep.subr.bf16.mxu0 0
    %1740 = vmatpush2.bf16.msra.mxu0 %v1680
    %1741 = vmatprep.subr.bf16.mxu0 0
    %1742 = vmatpush2.bf16.msra.mxu0 %v1679
    %1743 = vmatprep.subr.bf16.mxu0 0
    %1744 = vmatpush2.bf16.msra.mxu0 %v1678
    %1745 = vmatprep.mubr.bf16.mxu0 %v1547
    %1746 = vmatmul.mubr.bf16.gmra.mxu0 %v1546
    %v1747 = vpop.f32.mrf.mxu0
    %v1748 = vadd.f32 %v1589, %v1747
    %v1749 = vpop.f32.mrf.mxu0
    %v1750 = vpop.f32.mrf.mxu0
    %v1751 = vpop.f32.mrf.mxu0
    %1752 = vdwg.mxu0
    %1753 = vmatprep.subr.bf16.mxu0 0
    %1754 = vmatpush1.bf16.msra.mxu0 0
    %1755 = vmatprep.subr.bf16.mxu0 0
    %1756 = vmatpush1.bf16.msra.mxu0 0
    %1757 = vmatprep.subr.bf16.mxu0 0
    %1758 = vmatpush1.bf16.msra.mxu0 0
    %1759 = vmatprep.subr.bf16.mxu0 0
    %1760 = vmatpush1.bf16.msra.mxu0 0
    %1761 = vmatprep.subr.bf16.mxu0 0
    %1762 = vmatpush1.bf16.msra.mxu0 %v1689
    %1763 = vmatprep.subr.bf16.mxu0 0
    %1764 = vmatpush1.bf16.msra.mxu0 %v1688
    %1765 = vmatprep.subr.bf16.mxu0 0
    %1766 = vmatpush1.bf16.msra.mxu0 %v1687
    %1767 = vmatprep.subr.bf16.mxu0 0
    %1768 = vmatpush1.bf16.msra.mxu0 %v1686
    %1769 = vmatprep.subr.bf16.mxu0 0
    %1770 = vmatpush2.bf16.msra.mxu0 0
    %1771 = vmatprep.subr.bf16.mxu0 0
    %1772 = vmatpush2.bf16.msra.mxu0 0
    %1773 = vmatprep.subr.bf16.mxu0 0
    %1774 = vmatpush2.bf16.msra.mxu0 0
    %1775 = vmatprep.subr.bf16.mxu0 0
    %1776 = vmatpush2.bf16.msra.mxu0 0
    %1777 = vmatprep.subr.bf16.mxu0 0
    %1778 = vmatpush2.bf16.msra.mxu0 0
    %1779 = vmatprep.subr.bf16.mxu0 0
    %1780 = vmatpush2.bf16.msra.mxu0 0
    %1781 = vmatprep.subr.bf16.mxu0 0
    %1782 = vmatpush2.bf16.msra.mxu0 0
    %1783 = vmatprep.subr.bf16.mxu0 0
    %1784 = vmatpush2.bf16.msra.mxu0 0
    %1785 = vmatprep.mubr.bf16.mxu0 0
    %1786 = vmatmul.mubr.bf16.gmra.mxu0 %v1711
    %v1787 = vpop.f32.mrf.mxu0
    %v1788 = vadd.f32 %v1748, %v1787
    %v1789 = vpop.f32.mrf.mxu0
    %v1790 = vpop.f32.mrf.mxu0
    %v1791 = vpop.f32.mrf.mxu0
    %1792 = vdwg.mxu0
    %v1793 = vmax.f32 %v1788, 0.0
    %v1794 = vld [vmem:[%s1] sm:$0xff]
    %v1795 = vlaneseq
    %v1796 = vshrl.u32 %v1795, 7
    %v1797 = vsub.s32 0, %v1796
    %v1798 = vrot.slane %v1793, %v1797
    %v1799 = vmul.f32 %v1798, %v1794
    %v1800 = vsel %vm387, %v1799, 0.0
    %1801 = vadd.xlane.f32.xlu0 %v1800
    %v1802 = vpop.xlane.xlu0 %1801
    %v1803 = vadd.f32 %v1802, %v1794
    %v1804 = vmax.f32 %v1803, 0.0
    %1806 = vrot.lane.b32.xlu0 %v1794, 127
    %v1807 = vpop.permute.xlu0 %1806
    %v1809 = vmul.f32 %v1804, %v1807
    %vm1810 = vcmask 531968
    %v1811 = vsel %vm1810, %v1809, 0.0
    %v1812 = vrot.slane %v1811, 4
    %v1813 = vadd.f32 %v1811, %v1812
    %v1814 = vrot.slane %v1813, 2
    %v1815 = vadd.f32 %v1813, %v1814
    %v1816 = vrot.slane %v1815, 1
    %v1817 = vadd.f32 %v1815, %v1816
    %v1818 = vld [vmem:[%s1] ss:$0 sm:$0xff]
    %1820 = vrot.lane.b32.xlu0 %v1818, 126
    %v1821 = vpop.permute.xlu0 %1820
    %v1823 = vadd.f32 %v1817, %v1821
    %1825 = vrot.lane.b32.xlu0 %v1823, 64
    %v1826 = vpop.permute.xlu0 %1825
    %vm1828 = vcmask 0
    %1829 = vst.msk [vmem:[#allocation9] sm:$0x1] %vm1828, %v1826
    // Predicated region
    $region56: #{critic_forward.1} parent=1 // pred_check
      _
    $region57: #{critic_forward.1} parent=1 // pred_check_branch
      %1831 = sbr.rel (0) target = $region59
    $region58: #{critic_forward.1} parent=1 // pred_region
      %s1833 = ssub.s32 16, 16
      %1834 = vsyncadd [#allocation7], %s1833
      %s1836 = sshll.u32 [#allocation9], 4
      %s1837 = int_to_ptr.vmem [resolvable:$true] %s1836
      %1839 = dma.vmem_to_hbm [thread:$0]  %s1837, 16, %s5, [#allocation7]
    $region59: #{critic_forward.1} parent=1 // pred_fallthru
      _
    // Predicated region
    $region60: #{critic_forward.1} parent=1 // pred_check
      _
    $region61: #{critic_forward.1} parent=1 // pred_check_branch
      %1841 = sbr.rel (0) target = $region63
    $region62: #{critic_forward.1} parent=1 // pred_region
      %1842 = dma.done [#allocation7], 16
    $region63: #{critic_forward.1} parent=1 // pred_fallthru
      _
    %1843 = vsyncpa [#allocation7], 1
    %1844 = vsyncpa [#allocation8], 1
  %1845 = vsyncmov [#allocation5]
  %s1846 = vpop.sfrf %1845
  %p1847 = scmp.eq.s32.totalorder %s1846, 0
  %p1848 = pneg %p1847
  %1850 = shalt.err (%p1848)

</llo_original>
